<compile_context>
chip_gen: v6e
topology: v6e:2x2x1
jax: 0.10.0
libtpu: 0.0.40
codegen_flags: <defaults>
</compile_context>

<pallas_src>
import jax
import jax.numpy as jnp
from jax.experimental import pallas as pl
from jax.experimental.pallas import tpu as pltpu

BN_EPS = 1e-5
LANE = 128


def _round_up(n, m):
    return (n + m - 1) // m * m


# ----------------------------------------------------------------------------
# Fused kernel: up-conv + (conv1 -> BN -> ReLU) + (conv2 -> BN -> ReLU) + add
# ----------------------------------------------------------------------------
def _double_conv_kernel(x_ref, w1_ref, w2_ref, sb1_ref, sb2_ref, o_ref,
                        xpad_ref, h1pad_ref):
    f32 = jnp.float32
    TB, D, HCin = x_ref.shape
    HCout_p = o_ref.shape[2]
    P = D + 4                       # per-slab stride in the padded scratch
    R = TB * P

    # ---- D-padded input scratch: slab s interior at rows [s*P+2, s*P+D+2), -
    # ---- 2 zero halo rows above/below (pair-aligned for packed bf16). ------
    zx = jnp.zeros((2, HCin), xpad_ref.dtype)
    for s in range(TB):                               # TB is static & small
        base = s * P
        xpad_ref[base:base + 2, :] = zx
        xpad_ref[base + 2:base + 2 + D, :] = x_ref[s]
        xpad_ref[base + 2 + D:base + P, :] = zx

    # ---- stage 1: up-conv + conv1 fused in one banded matmul over ALL slabs.
    # acc1[j] = conv output at padded row j+1.  Halo rows stop cross-slab tap
    # bleed; their (zero-input) outputs are never stored.
    acc1 = jnp.dot(xpad_ref[0:R - 2, :], w1_ref[0], preferred_element_type=f32)
    acc1 += jnp.dot(xpad_ref[1:R - 1, :], w1_ref[1], preferred_element_type=f32)
    acc1 += jnp.dot(xpad_ref[2:R, :], w1_ref[2], preferred_element_type=f32)
    y1 = acc1 * sb1_ref[0:1, :] + sb1_ref[1:2, :]     # fused conv-bias + BN
    up = y1[:, :HCout_p]                              # plain conv branch (no ReLU)
    h1 = jnp.maximum(y1[:, HCout_p:], 0.0)            # relu(bn1(conv1(x)))

    # ---- stage-2 input scratch (same halo layout as xpad), bf16 for the MXU.
    # h1pad[j] holds the value at padded row j; halos re-zeroed AFTER the copy.
    h1pad_ref[1:R - 1, :] = h1.astype(h1pad_ref.dtype)
    zh = jnp.zeros((2, HCout_p), h1pad_ref.dtype)
    for s in range(TB):
        base = s * P
        h1pad_ref[base:base + 2, :] = zh
        h1pad_ref[base + 2 + D:base + P, :] = zh

    # ---- stage 2: conv2 + BN + ReLU + residual add. -------------------------
    acc2 = jnp.dot(h1pad_ref[0:R - 2, :], w2_ref[0], preferred_element_type=f32)
    acc2 += jnp.dot(h1pad_ref[1:R - 1, :], w2_ref[1], preferred_element_type=f32)
    acc2 += jnp.dot(h1pad_ref[2:R, :], w2_ref[2], preferred_element_type=f32)
    y2 = jnp.maximum(acc2 * sb2_ref[0:1, :] + sb2_ref[1:2, :], 0.0) + up

    # ---- lane-dense (multiple-of-128) per-slab bf16 stores. -----------------
    for s in range(TB):
        o_ref[s] = y2[s * P + 1:s * P + 1 + D, :].astype(o_ref.dtype)


# ----------------------------------------------------------------------------
# Host-side weight preparation
# ----------------------------------------------------------------------------
def _band_weights(w_pt, H):
    """(Cout, Cin, 3, 3, 1) conv weights -> (3, H*Cin, H*Cout) banded matmul
    weights: the kH taps and the H zero-padding are baked into the matrix."""
    wk = w_pt[..., 0]                                   # (o, c, kd, kh)
    cout, cin = wk.shape[0], wk.shape[1]
    h = jnp.arange(H)
    # S[kh, h_out, h_in] = 1 iff h_in == h_out + kh - 1 (implicit zero pad in H)
    S = (h[None, None, :] == h[None, :, None] + jnp.arange(3)[:, None, None] - 1)
    band = jnp.einsum('khg,ocdk->dgcho', S.astype(wk.dtype), wk)
    return band.reshape(3, H * cin, H * cout)


def _fuse_bn(pp):
    # TODO(synk): inference-mode BN (running stats) is fused; PyTorch's default
    # training mode would use batch statistics instead.
    scale = pp["gamma"] / jnp.sqrt(pp["var"] + BN_EPS)
    bias = pp["beta"] + (pp["b"] - pp["mean"]) * scale
    return scale, bias


# ----------------------------------------------------------------------------
# Module wrapper
# ----------------------------------------------------------------------------
def double_conv2d_forward(x, params, *, out_dtype=jnp.bfloat16):
    """x: (N, C, D, H, W) float32 — same layout as the PyTorch module."""
    N, Cin, D, H, W = x.shape
    Cout = params["conv1"]["w"].shape[0]
    B = N * W
    HCin = H * Cin
    HCout = H * Cout
    HCout_p = _round_up(HCout, LANE)          # lane-dense stores + stage-2 K
    P = D + 4

    # Slabs per grid step: grow M (MXU rows) to a few hundred, cap the static
    # unroll, and keep the parallel grid >= 2 steps so both v7x TCs get work.
    TB = max(1, min(512 // P if P <= 512 else 1, 32, (B + 1) // 2))
    G = (B + TB - 1) // TB
    B_pad = G * TB

    # NCDHW -> (N*W, D, H*Cin): fold W into batch; flatten (H, C) lane-dense.
    x2 = jnp.transpose(x, (0, 4, 2, 3, 1)).reshape(B, D, HCin).astype(jnp.bfloat16)
    if B_pad != B:
        x2 = jnp.pad(x2, ((0, B_pad - B), (0, 0), (0, 0)))

    # Banded weights; output (and stage-2 input) axes zero-padded to HCout_p.
    pad_n = HCout_p - HCout
    w_up = jnp.pad(_band_weights(params["up"]["w"], H), ((0, 0), (0, 0), (0, pad_n)))
    w_c1 = jnp.pad(_band_weights(params["conv1"]["w"], H), ((0, 0), (0, 0), (0, pad_n)))
    w_c2 = jnp.pad(_band_weights(params["conv2"]["w"], H), ((0, 0), (0, pad_n), (0, pad_n)))
    w1 = jnp.concatenate([w_up, w_c1], axis=-1).astype(jnp.bfloat16)  # (3, HCin, 2*HCout_p)
    w2 = w_c2.astype(jnp.bfloat16)                                    # (3, HCout_p, HCout_p)

    # Per-output-lane (h, co) scale/bias: fused conv-bias + inference BN,
    # pre-tiled and padded on the host so padded lanes compute to exactly 0.
    s1, b1 = _fuse_bn(params["conv1"])
    s2, b2 = _fuse_bn(params["conv2"])
    pad1 = lambda v: jnp.concatenate([v, jnp.ones((pad_n,), v.dtype)]) if pad_n else v
    pad0 = lambda v: jnp.concatenate([v, jnp.zeros((pad_n,), v.dtype)]) if pad_n else v
    sb1 = jnp.stack([
        jnp.concatenate([jnp.ones((HCout_p,), jnp.float32), pad1(jnp.tile(s1, H))]),
        jnp.concatenate([pad0(jnp.tile(params["up"]["b"], H)), pad0(jnp.tile(b1, H))]),
    ])                                                                # (2, 2*HCout_p)
    sb2 = jnp.stack([pad1(jnp.tile(s2, H)), pad0(jnp.tile(b2, H))])   # (2, HCout_p)

    out_isz = jnp.dtype(out_dtype).itemsize
    rows = G * (TB * P - 2)
    flops = 2 * rows * 3 * (HCin * 2 * HCout_p + HCout_p * HCout_p)
    bytes_accessed = (x2.size * 2 + w1.size * 2 + w2.size * 2
                      + (sb1.size + sb2.size) * 4 + B_pad * D * HCout_p * out_isz)

    # Explicit scoped-VMEM budget: double-buffered activation blocks, single-
    # buffered constants, padded scratch, f32 live intermediates, 2x headroom.
    vmem_need = (2 * (TB * D * HCin * 2 + TB * D * HCout_p * out_isz)
                 + w1.size * 2 + w2.size * 2 + (sb1.size + sb2.size) * 4
                 + TB * P * (HCin + HCout_p) * 2
                 + TB * P * (4 * HCout_p) * 4)
    vmem_limit = int(min(64 * 2**20, max(16 * 2**20, 2 * vmem_need)))

    out = pl.pallas_call(
        _double_conv_kernel,
        out_shape=jax.ShapeDtypeStruct((B_pad, D, HCout_p), out_dtype),
        grid=(G,),
        in_specs=[
            pl.BlockSpec((TB, D, HCin), lambda g: (g, 0, 0)),
            # Grid-invariant operands: single-buffered to save VMEM (v7x 64 MiB).
            pl.BlockSpec((3, HCin, 2 * HCout_p), lambda g: (0, 0, 0),
                         pipeline_mode=pl.Buffered(1)),
            pl.BlockSpec((3, HCout_p, HCout_p), lambda g: (0, 0, 0),
                         pipeline_mode=pl.Buffered(1)),
            pl.BlockSpec((2, 2 * HCout_p), lambda g: (0, 0),
                         pipeline_mode=pl.Buffered(1)),
            pl.BlockSpec((2, HCout_p), lambda g: (0, 0),
                         pipeline_mode=pl.Buffered(1)),
        ],
        out_specs=pl.BlockSpec((TB, D, HCout_p), lambda g: (g, 0, 0)),
        scratch_shapes=[
            pltpu.VMEM((TB * P, HCin), jnp.bfloat16),     # D-padded input slabs
            pltpu.VMEM((TB * P, HCout_p), jnp.bfloat16),  # D-padded h1 slabs
        ],
        compiler_params=pltpu.CompilerParams(
            dimension_semantics=("parallel",),
            vmem_limit_bytes=vmem_limit),
        cost_estimate=pl.CostEstimate(
            flops=flops, transcendentals=0, bytes_accessed=bytes_accessed),
    )(x2, w1, w2, sb1, sb2)

    # (B_pad, D, HCout_p) -> (N, Cout, D, H, W); drop batch & lane padding.
    out = out[:B, :, :HCout].reshape(N, W, D, H, Cout)
    return jnp.transpose(out, (0, 4, 2, 3, 1))


# ----------------------------------------------------------------------------
# Deterministic parameters matching DoubleConv2d(cin, cout) shapes
# ----------------------------------------------------------------------------
def make_params(key, cin, cout):
    names = ("conv1", "conv2", "up")
    keys = jax.random.split(key, 6 * len(names))
    p = {}
    for i, name in enumerate(names):
        k = keys[6 * i:6 * (i + 1)]
        c_in = cin if name in ("conv1", "up") else cout
        p[name] = {
            "w": 0.1 * jax.random.normal(k[0], (cout, c_in, 3, 3, 1), jnp.float32),
            "b": 0.1 * jax.random.normal(k[1], (cout,), jnp.float32),
        }
        if name != "up":  # BatchNorm3d params (inference mode / running stats)
            p[name]["gamma"] = 1.0 + 0.1 * jax.random.normal(k[2], (cout,), jnp.float32)
            p[name]["beta"] = 0.1 * jax.random.normal(k[3], (cout,), jnp.float32)
            p[name]["mean"] = 0.05 * jax.random.normal(k[4], (cout,), jnp.float32)
            p[name]["var"] = 0.5 + jax.random.uniform(k[5], (cout,), jnp.float32)
    return p


# ----------------------------------------------------------------------------
# Pure-JAX f32 reference (correctness check)
# ----------------------------------------------------------------------------
def _ref_conv3d(x, w, b):
    y = jax.lax.conv_general_dilated(
        x, w, window_strides=(1, 1, 1),
        padding=((1, 1), (1, 1), (0, 0)),
        dimension_numbers=("NCDHW", "OIDHW", "NCDHW"))
    return y + b[None, :, None, None, None]


def _ref_bn_relu(y, pp):
    g = pp["gamma"][None, :, None, None, None]
    be = pp["beta"][None, :, None, None, None]
    m = pp["mean"][None, :, None, None, None]
    v = pp["var"][None, :, None, None, None]
    return jnp.maximum((y - m) / jnp.sqrt(v + BN_EPS) * g + be, 0.0)


def double_conv2d_reference(x, params):
    up = _ref_conv3d(x, params["up"]["w"], params["up"]["b"])
    h1 = _ref_bn_relu(_ref_conv3d(x, params["conv1"]["w"], params["conv1"]["b"]),
                      params["conv1"])
    h2 = _ref_bn_relu(_ref_conv3d(h1, params["conv2"]["w"], params["conv2"]["b"]),
                      params["conv2"])
    return up + h2


# ----------------------------------------------------------------------------
if __name__ == "__main__":
    N, Cin, Cout, D, H, W = 2, 4, 8, 16, 12, 3
    key = jax.random.PRNGKey(0)
    kx, kp = jax.random.split(key)
    x = jax.random.normal(kx, (N, Cin, D, H, W), jnp.float32)
    params = make_params(kp, Cin, Cout)

    out = double_conv2d_forward(x, params)          # B=6 -> TB=3, grid=(2,)
    jax.block_until_ready(out)

    ref = double_conv2d_reference(x, params)
    assert out.shape == (N, Cout, D, H, W), out.shape
    out_f32 = out.astype(jnp.float32)
    # bf16 MXU operands, bf16 h1 and bf16 output store (f32 accumulation) ->
    # relaxed tolerance vs the f32 reference.
    max_err = float(jnp.max(jnp.abs(out_f32 - ref)))
    assert jnp.allclose(out_f32, ref, atol=5e-2, rtol=5e-2), max_err

    print("KERNEL_OK")
</pallas_src>

<mosaic_0001>
module attributes {stable_mosaic.version = 11 : i64} {
  func.func @_double_conv_kernel(%arg0: i32, %arg1: memref<3x16x48xbf16, #tpu.memory_space<vmem>>, %arg2: memref<3x48x256xbf16, #tpu.memory_space<vmem>>, %arg3: memref<3x128x128xbf16, #tpu.memory_space<vmem>>, %arg4: memref<2x256xf32, #tpu.memory_space<vmem>>, %arg5: memref<2x128xf32, #tpu.memory_space<vmem>>, %arg6: memref<3x16x128xbf16, #tpu.memory_space<vmem>>, %arg7: memref<60x48xbf16, #tpu.memory_space<vmem>>, %arg8: memref<60x128xbf16, #tpu.memory_space<vmem>>) attributes {dimension_semantics = [#tpu.dimension_semantics<parallel>], iteration_bounds = array<i64: 2>, scalar_prefetch = 0 : i64, scratch_operands = 2 : i64, tpu.core_type = #tpu.core_type<tc>, window_params = [{transform_indices = @transform_0, window_bounds = array<i64: 3, 16, 48>}, {pipeline_mode = #tpu.pipeline_mode<synchronous>, transform_indices = @transform_1, window_bounds = array<i64: 3, 48, 256>}, {pipeline_mode = #tpu.pipeline_mode<synchronous>, transform_indices = @transform_2, window_bounds = array<i64: 3, 128, 128>}, {pipeline_mode = #tpu.pipeline_mode<synchronous>, transform_indices = @transform_3, window_bounds = array<i64: 2, 256>}, {pipeline_mode = #tpu.pipeline_mode<synchronous>, transform_indices = @transform_4, window_bounds = array<i64: 2, 128>}, {transform_indices = @transform_5, window_bounds = array<i64: 3, 16, 128>}]} {
    %cst = arith.constant 0.000000e+00 : bf16
    %0 = vector.broadcast %cst : bf16 to vector<2x48xbf16>
    %c0 = arith.constant 0 : index
    %c0_0 = arith.constant 0 : index
    %1 = vector.load %arg7[%c0, %c0_0] : memref<60x48xbf16, #tpu.memory_space<vmem>>, vector<2x48xbf16>
    tpu.vector_store %arg7[%c0, %c0_0], %0 {strides = array<i32>} : memref<60x48xbf16, #tpu.memory_space<vmem>>, vector<2x48xbf16>,
    %c0_1 = arith.constant 0 : index
    %c0_2 = arith.constant 0 : index
    %c0_3 = arith.constant 0 : index
    %2 = vector.load %arg1[%c0_1, %c0_2, %c0_3] : memref<3x16x48xbf16, #tpu.memory_space<vmem>>, vector<1x16x48xbf16>
    %3 = vector.shape_cast %2 : vector<1x16x48xbf16> to vector<16x48xbf16>
    %c2 = arith.constant 2 : index
    %c0_4 = arith.constant 0 : index
    %4 = vector.load %arg7[%c2, %c0_4] : memref<60x48xbf16, #tpu.memory_space<vmem>>, vector<16x48xbf16>
    tpu.vector_store %arg7[%c2, %c0_4], %3 {strides = array<i32>} : memref<60x48xbf16, #tpu.memory_space<vmem>>, vector<16x48xbf16>,
    %c18 = arith.constant 18 : index
    %c0_5 = arith.constant 0 : index
    %5 = vector.load %arg7[%c18, %c0_5] : memref<60x48xbf16, #tpu.memory_space<vmem>>, vector<2x48xbf16>
    tpu.vector_store %arg7[%c18, %c0_5], %0 {strides = array<i32>} : memref<60x48xbf16, #tpu.memory_space<vmem>>, vector<2x48xbf16>,
    %c20 = arith.constant 20 : index
    %c0_6 = arith.constant 0 : index
    %6 = vector.load %arg7[%c20, %c0_6] : memref<60x48xbf16, #tpu.memory_space<vmem>>, vector<2x48xbf16>
    tpu.vector_store %arg7[%c20, %c0_6], %0 {strides = array<i32>} : memref<60x48xbf16, #tpu.memory_space<vmem>>, vector<2x48xbf16>,
    %c1 = arith.constant 1 : index
    %c0_7 = arith.constant 0 : index
    %c0_8 = arith.constant 0 : index
    %7 = vector.load %arg1[%c1, %c0_7, %c0_8] : memref<3x16x48xbf16, #tpu.memory_space<vmem>>, vector<1x16x48xbf16>
    %8 = vector.shape_cast %7 : vector<1x16x48xbf16> to vector<16x48xbf16>
    %c22 = arith.constant 22 : index
    %c0_9 = arith.constant 0 : index
    %9 = vector.load %arg7[%c22, %c0_9] : memref<60x48xbf16, #tpu.memory_space<vmem>>, vector<16x48xbf16>
    tpu.vector_store %arg7[%c22, %c0_9], %8 {strides = array<i32>} : memref<60x48xbf16, #tpu.memory_space<vmem>>, vector<16x48xbf16>,
    %c38 = arith.constant 38 : index
    %c0_10 = arith.constant 0 : index
    %10 = vector.load %arg7[%c38, %c0_10] : memref<60x48xbf16, #tpu.memory_space<vmem>>, vector<2x48xbf16>
    tpu.vector_store %arg7[%c38, %c0_10], %0 {strides = array<i32>} : memref<60x48xbf16, #tpu.memory_space<vmem>>, vector<2x48xbf16>,
    %c40 = arith.constant 40 : index
    %c0_11 = arith.constant 0 : index
    %11 = vector.load %arg7[%c40, %c0_11] : memref<60x48xbf16, #tpu.memory_space<vmem>>, vector<2x48xbf16>
    tpu.vector_store %arg7[%c40, %c0_11], %0 {strides = array<i32>} : memref<60x48xbf16, #tpu.memory_space<vmem>>, vector<2x48xbf16>,
    %c2_12 = arith.constant 2 : index
    %c0_13 = arith.constant 0 : index
    %c0_14 = arith.constant 0 : index
    %12 = vector.load %arg1[%c2_12, %c0_13, %c0_14] : memref<3x16x48xbf16, #tpu.memory_space<vmem>>, vector<1x16x48xbf16>
    %13 = vector.shape_cast %12 : vector<1x16x48xbf16> to vector<16x48xbf16>
    %c42 = arith.constant 42 : index
    %c0_15 = arith.constant 0 : index
    %14 = vector.load %arg7[%c42, %c0_15] : memref<60x48xbf16, #tpu.memory_space<vmem>>, vector<16x48xbf16>
    tpu.vector_store %arg7[%c42, %c0_15], %13 {strides = array<i32>} : memref<60x48xbf16, #tpu.memory_space<vmem>>, vector<16x48xbf16>,
    %c58 = arith.constant 58 : index
    %c0_16 = arith.constant 0 : index
    %15 = vector.load %arg7[%c58, %c0_16] : memref<60x48xbf16, #tpu.memory_space<vmem>>, vector<2x48xbf16>
    tpu.vector_store %arg7[%c58, %c0_16], %0 {strides = array<i32>} : memref<60x48xbf16, #tpu.memory_space<vmem>>, vector<2x48xbf16>,
    %c0_17 = arith.constant 0 : index
    %c0_18 = arith.constant 0 : index
    %16 = vector.load %arg7[%c0_17, %c0_18] : memref<60x48xbf16, #tpu.memory_space<vmem>>, vector<58x48xbf16>
    %c0_19 = arith.constant 0 : index
    %c0_20 = arith.constant 0 : index
    %c0_21 = arith.constant 0 : index
    %17 = vector.load %arg2[%c0_19, %c0_20, %c0_21] : memref<3x48x256xbf16, #tpu.memory_space<vmem>>, vector<1x48x256xbf16>
    %18 = vector.shape_cast %17 : vector<1x48x256xbf16> to vector<48x256xbf16>
    %cst_22 = arith.constant dense<0.000000e+00> : vector<58x256xf32>
    %19 = tpu.matmul %16, %18, %cst_22 {dimension_numbers = #tpu.dot_dimension_numbers<[1], [0], [0], [1], [0, 0, 1, 1], [], []>} : vector<58x48xbf16>, vector<48x256xbf16>, vector<58x256xf32> -> vector<58x256xf32>
    %c1_23 = arith.constant 1 : index
    %c0_24 = arith.constant 0 : index
    %20 = vector.load %arg7[%c1_23, %c0_24] : memref<60x48xbf16, #tpu.memory_space<vmem>>, vector<58x48xbf16>
    %c1_25 = arith.constant 1 : index
    %c0_26 = arith.constant 0 : index
    %c0_27 = arith.constant 0 : index
    %21 = vector.load %arg2[%c1_25, %c0_26, %c0_27] : memref<3x48x256xbf16, #tpu.memory_space<vmem>>, vector<1x48x256xbf16>
    %22 = vector.shape_cast %21 : vector<1x48x256xbf16> to vector<48x256xbf16>
    %cst_28 = arith.constant dense<0.000000e+00> : vector<58x256xf32>
    %23 = tpu.matmul %20, %22, %cst_28 {dimension_numbers = #tpu.dot_dimension_numbers<[1], [0], [0], [1], [0, 0, 1, 1], [], []>} : vector<58x48xbf16>, vector<48x256xbf16>, vector<58x256xf32> -> vector<58x256xf32>
    %24 = arith.addf %19, %23 : vector<58x256xf32>
    %c2_29 = arith.constant 2 : index
    %c0_30 = arith.constant 0 : index
    %25 = vector.load %arg7[%c2_29, %c0_30] : memref<60x48xbf16, #tpu.memory_space<vmem>>, vector<58x48xbf16>
    %c2_31 = arith.constant 2 : index
    %c0_32 = arith.constant 0 : index
    %c0_33 = arith.constant 0 : index
    %26 = vector.load %arg2[%c2_31, %c0_32, %c0_33] : memref<3x48x256xbf16, #tpu.memory_space<vmem>>, vector<1x48x256xbf16>
    %27 = vector.shape_cast %26 : vector<1x48x256xbf16> to vector<48x256xbf16>
    %cst_34 = arith.constant dense<0.000000e+00> : vector<58x256xf32>
    %28 = tpu.matmul %25, %27, %cst_34 {dimension_numbers = #tpu.dot_dimension_numbers<[1], [0], [0], [1], [0, 0, 1, 1], [], []>} : vector<58x48xbf16>, vector<48x256xbf16>, vector<58x256xf32> -> vector<58x256xf32>
    %29 = arith.addf %24, %28 : vector<58x256xf32>
    %c0_35 = arith.constant 0 : index
    %c0_36 = arith.constant 0 : index
    %30 = vector.load %arg4[%c0_35, %c0_36] : memref<2x256xf32, #tpu.memory_space<vmem>>, vector<1x256xf32>
    %31 = vector.broadcast %30 : vector<1x256xf32> to vector<58x256xf32>
    %32 = arith.mulf %29, %31 : vector<58x256xf32>
    %c1_37 = arith.constant 1 : index
    %c0_38 = arith.constant 0 : index
    %33 = vector.load %arg4[%c1_37, %c0_38] : memref<2x256xf32, #tpu.memory_space<vmem>>, vector<1x256xf32>
    %34 = vector.broadcast %33 : vector<1x256xf32> to vector<58x256xf32>
    %35 = arith.addf %32, %34 : vector<58x256xf32>
    %36 = vector.extract_strided_slice %35 {offsets = [0, 0], sizes = [58, 128], strides = [1, 1]} : vector<58x256xf32> to vector<58x128xf32>
    %37 = vector.extract_strided_slice %35 {offsets = [0, 128], sizes = [58, 128], strides = [1, 1]} : vector<58x256xf32> to vector<58x128xf32>
    %cst_39 = arith.constant 0.000000e+00 : f32
    %38 = vector.broadcast %cst_39 : f32 to vector<58x128xf32>
    %39 = arith.maximumf %37, %38 : vector<58x128xf32>
    %40 = arith.truncf %39 : vector<58x128xf32> to vector<58x128xbf16>
    %c1_40 = arith.constant 1 : index
    %c0_41 = arith.constant 0 : index
    %41 = vector.load %arg8[%c1_40, %c0_41] : memref<60x128xbf16, #tpu.memory_space<vmem>>, vector<58x128xbf16>
    tpu.vector_store %arg8[%c1_40, %c0_41], %40 {strides = array<i32>} : memref<60x128xbf16, #tpu.memory_space<vmem>>, vector<58x128xbf16>,
    %cst_42 = arith.constant 0.000000e+00 : bf16
    %42 = vector.broadcast %cst_42 : bf16 to vector<2x128xbf16>
    %c0_43 = arith.constant 0 : index
    %c0_44 = arith.constant 0 : index
    %43 = vector.load %arg8[%c0_43, %c0_44] : memref<60x128xbf16, #tpu.memory_space<vmem>>, vector<2x128xbf16>
    tpu.vector_store %arg8[%c0_43, %c0_44], %42 {strides = array<i32>} : memref<60x128xbf16, #tpu.memory_space<vmem>>, vector<2x128xbf16>,
    %c18_45 = arith.constant 18 : index
    %c0_46 = arith.constant 0 : index
    %44 = vector.load %arg8[%c18_45, %c0_46] : memref<60x128xbf16, #tpu.memory_space<vmem>>, vector<2x128xbf16>
    tpu.vector_store %arg8[%c18_45, %c0_46], %42 {strides = array<i32>} : memref<60x128xbf16, #tpu.memory_space<vmem>>, vector<2x128xbf16>,
    %c20_47 = arith.constant 20 : index
    %c0_48 = arith.constant 0 : index
    %45 = vector.load %arg8[%c20_47, %c0_48] : memref<60x128xbf16, #tpu.memory_space<vmem>>, vector<2x128xbf16>
    tpu.vector_store %arg8[%c20_47, %c0_48], %42 {strides = array<i32>} : memref<60x128xbf16, #tpu.memory_space<vmem>>, vector<2x128xbf16>,
    %c38_49 = arith.constant 38 : index
    %c0_50 = arith.constant 0 : index
    %46 = vector.load %arg8[%c38_49, %c0_50] : memref<60x128xbf16, #tpu.memory_space<vmem>>, vector<2x128xbf16>
    tpu.vector_store %arg8[%c38_49, %c0_50], %42 {strides = array<i32>} : memref<60x128xbf16, #tpu.memory_space<vmem>>, vector<2x128xbf16>,
    %c40_51 = arith.constant 40 : index
    %c0_52 = arith.constant 0 : index
    %47 = vector.load %arg8[%c40_51, %c0_52] : memref<60x128xbf16, #tpu.memory_space<vmem>>, vector<2x128xbf16>
    tpu.vector_store %arg8[%c40_51, %c0_52], %42 {strides = array<i32>} : memref<60x128xbf16, #tpu.memory_space<vmem>>, vector<2x128xbf16>,
    %c58_53 = arith.constant 58 : index
    %c0_54 = arith.constant 0 : index
    %48 = vector.load %arg8[%c58_53, %c0_54] : memref<60x128xbf16, #tpu.memory_space<vmem>>, vector<2x128xbf16>
    tpu.vector_store %arg8[%c58_53, %c0_54], %42 {strides = array<i32>} : memref<60x128xbf16, #tpu.memory_space<vmem>>, vector<2x128xbf16>,
    %c0_55 = arith.constant 0 : index
    %c0_56 = arith.constant 0 : index
    %49 = vector.load %arg8[%c0_55, %c0_56] : memref<60x128xbf16, #tpu.memory_space<vmem>>, vector<58x128xbf16>
    %c0_57 = arith.constant 0 : index
    %c0_58 = arith.constant 0 : index
    %c0_59 = arith.constant 0 : index
    %50 = vector.load %arg3[%c0_57, %c0_58, %c0_59] : memref<3x128x128xbf16, #tpu.memory_space<vmem>>, vector<1x128x128xbf16>
    %51 = vector.shape_cast %50 : vector<1x128x128xbf16> to vector<128x128xbf16>
    %cst_60 = arith.constant dense<0.000000e+00> : vector<58x128xf32>
    %52 = tpu.matmul %49, %51, %cst_60 {dimension_numbers = #tpu.dot_dimension_numbers<[1], [0], [0], [1], [0, 0, 1, 1], [], []>} : vector<58x128xbf16>, vector<128x128xbf16>, vector<58x128xf32> -> vector<58x128xf32>
    %c1_61 = arith.constant 1 : index
    %c0_62 = arith.constant 0 : index
    %53 = vector.load %arg8[%c1_61, %c0_62] : memref<60x128xbf16, #tpu.memory_space<vmem>>, vector<58x128xbf16>
    %c1_63 = arith.constant 1 : index
    %c0_64 = arith.constant 0 : index
    %c0_65 = arith.constant 0 : index
    %54 = vector.load %arg3[%c1_63, %c0_64, %c0_65] : memref<3x128x128xbf16, #tpu.memory_space<vmem>>, vector<1x128x128xbf16>
    %55 = vector.shape_cast %54 : vector<1x128x128xbf16> to vector<128x128xbf16>
    %cst_66 = arith.constant dense<0.000000e+00> : vector<58x128xf32>
    %56 = tpu.matmul %53, %55, %cst_66 {dimension_numbers = #tpu.dot_dimension_numbers<[1], [0], [0], [1], [0, 0, 1, 1], [], []>} : vector<58x128xbf16>, vector<128x128xbf16>, vector<58x128xf32> -> vector<58x128xf32>
    %57 = arith.addf %52, %56 : vector<58x128xf32>
    %c2_67 = arith.constant 2 : index
    %c0_68 = arith.constant 0 : index
    %58 = vector.load %arg8[%c2_67, %c0_68] : memref<60x128xbf16, #tpu.memory_space<vmem>>, vector<58x128xbf16>
    %c2_69 = arith.constant 2 : index
    %c0_70 = arith.constant 0 : index
    %c0_71 = arith.constant 0 : index
    %59 = vector.load %arg3[%c2_69, %c0_70, %c0_71] : memref<3x128x128xbf16, #tpu.memory_space<vmem>>, vector<1x128x128xbf16>
    %60 = vector.shape_cast %59 : vector<1x128x128xbf16> to vector<128x128xbf16>
    %cst_72 = arith.constant dense<0.000000e+00> : vector<58x128xf32>
    %61 = tpu.matmul %58, %60, %cst_72 {dimension_numbers = #tpu.dot_dimension_numbers<[1], [0], [0], [1], [0, 0, 1, 1], [], []>} : vector<58x128xbf16>, vector<128x128xbf16>, vector<58x128xf32> -> vector<58x128xf32>
    %62 = arith.addf %57, %61 : vector<58x128xf32>
    %c0_73 = arith.constant 0 : index
    %c0_74 = arith.constant 0 : index
    %63 = vector.load %arg5[%c0_73, %c0_74] : memref<2x128xf32, #tpu.memory_space<vmem>>, vector<1x128xf32>
    %64 = vector.broadcast %63 : vector<1x128xf32> to vector<58x128xf32>
    %65 = arith.mulf %62, %64 : vector<58x128xf32>
    %c1_75 = arith.constant 1 : index
    %c0_76 = arith.constant 0 : index
    %66 = vector.load %arg5[%c1_75, %c0_76] : memref<2x128xf32, #tpu.memory_space<vmem>>, vector<1x128xf32>
    %67 = vector.broadcast %66 : vector<1x128xf32> to vector<58x128xf32>
    %68 = arith.addf %65, %67 : vector<58x128xf32>
    %cst_77 = arith.constant 0.000000e+00 : f32
    %69 = vector.broadcast %cst_77 : f32 to vector<58x128xf32>
    %70 = arith.maximumf %68, %69 : vector<58x128xf32>
    %71 = arith.addf %70, %36 : vector<58x128xf32>
    %72 = vector.extract_strided_slice %71 {offsets = [1, 0], sizes = [16, 128], strides = [1, 1]} : vector<58x128xf32> to vector<16x128xf32>
    %73 = arith.truncf %72 : vector<16x128xf32> to vector<16x128xbf16>
    %c0_78 = arith.constant 0 : index
    %c0_79 = arith.constant 0 : index
    %c0_80 = arith.constant 0 : index
    %74 = vector.load %arg6[%c0_78, %c0_79, %c0_80] : memref<3x16x128xbf16, #tpu.memory_space<vmem>>, vector<1x16x128xbf16>
    %75 = vector.shape_cast %74 : vector<1x16x128xbf16> to vector<16x128xbf16>
    %76 = vector.shape_cast %73 : vector<16x128xbf16> to vector<1x16x128xbf16>
    tpu.vector_store %arg6[%c0_78, %c0_79, %c0_80], %76 {strides = array<i32>} : memref<3x16x128xbf16, #tpu.memory_space<vmem>>, vector<1x16x128xbf16>,
    %77 = vector.extract_strided_slice %71 {offsets = [21, 0], sizes = [16, 128], strides = [1, 1]} : vector<58x128xf32> to vector<16x128xf32>
    %78 = arith.truncf %77 : vector<16x128xf32> to vector<16x128xbf16>
    %c1_81 = arith.constant 1 : index
    %c0_82 = arith.constant 0 : index
    %c0_83 = arith.constant 0 : index
    %79 = vector.load %arg6[%c1_81, %c0_82, %c0_83] : memref<3x16x128xbf16, #tpu.memory_space<vmem>>, vector<1x16x128xbf16>
    %80 = vector.shape_cast %79 : vector<1x16x128xbf16> to vector<16x128xbf16>
    %81 = vector.shape_cast %78 : vector<16x128xbf16> to vector<1x16x128xbf16>
    tpu.vector_store %arg6[%c1_81, %c0_82, %c0_83], %81 {strides = array<i32>} : memref<3x16x128xbf16, #tpu.memory_space<vmem>>, vector<1x16x128xbf16>,
    %82 = vector.extract_strided_slice %71 {offsets = [41, 0], sizes = [16, 128], strides = [1, 1]} : vector<58x128xf32> to vector<16x128xf32>
    %83 = arith.truncf %82 : vector<16x128xf32> to vector<16x128xbf16>
    %c2_84 = arith.constant 2 : index
    %c0_85 = arith.constant 0 : index
    %c0_86 = arith.constant 0 : index
    %84 = vector.load %arg6[%c2_84, %c0_85, %c0_86] : memref<3x16x128xbf16, #tpu.memory_space<vmem>>, vector<1x16x128xbf16>
    %85 = vector.shape_cast %84 : vector<1x16x128xbf16> to vector<16x128xbf16>
    %86 = vector.shape_cast %83 : vector<16x128xbf16> to vector<1x16x128xbf16>
    tpu.vector_store %arg6[%c2_84, %c0_85, %c0_86], %86 {strides = array<i32>} : memref<3x16x128xbf16, #tpu.memory_space<vmem>>, vector<1x16x128xbf16>,
    return
  }
  func.func @transform_0(%arg0: i32) -> (i32, i32, i32) {
    %c0_i32 = arith.constant 0 : i32
    %c0_i32_0 = arith.constant 0 : i32
    %c0_i32_1 = arith.constant 0 : i32
    return %arg0, %c0_i32, %c0_i32_0 : i32, i32, i32
  }
  func.func @transform_1(%arg0: i32) -> (i32, i32, i32) {
    %c0_i32 = arith.constant 0 : i32
    %c0_i32_0 = arith.constant 0 : i32
    %c0_i32_1 = arith.constant 0 : i32
    %c0_i32_2 = arith.constant 0 : i32
    return %c0_i32, %c0_i32_0, %c0_i32_1 : i32, i32, i32
  }
  func.func @transform_2(%arg0: i32) -> (i32, i32, i32) {
    %c0_i32 = arith.constant 0 : i32
    %c0_i32_0 = arith.constant 0 : i32
    %c0_i32_1 = arith.constant 0 : i32
    %c0_i32_2 = arith.constant 0 : i32
    return %c0_i32, %c0_i32_0, %c0_i32_1 : i32, i32, i32
  }
  func.func @transform_3(%arg0: i32) -> (i32, i32) {
    %c0_i32 = arith.constant 0 : i32
    %c0_i32_0 = arith.constant 0 : i32
    %c0_i32_1 = arith.constant 0 : i32
    return %c0_i32, %c0_i32_0 : i32, i32
  }
  func.func @transform_4(%arg0: i32) -> (i32, i32) {
    %c0_i32 = arith.constant 0 : i32
    %c0_i32_0 = arith.constant 0 : i32
    %c0_i32_1 = arith.constant 0 : i32
    return %c0_i32, %c0_i32_0 : i32, i32
  }
  func.func @transform_5(%arg0: i32) -> (i32, i32, i32) {
    %c0_i32 = arith.constant 0 : i32
    %c0_i32_0 = arith.constant 0 : i32
    %c0_i32_1 = arith.constant 0 : i32
    return %arg0, %c0_i32, %c0_i32_0 : i32, i32, i32
  }
}

</mosaic_0001>

<llo_original>
// kernel: tpu_custom_call.1
$region0: #{tpu_custom_call.1}
  #allocation0 [shape = 'u32[]', space=smem, size = 0x4, offset = 0x4, fixed_abs, tag = 'smem constant byte address 0x4 - core index']
  #allocation1 [shape = 'u32[144,128]{1,0:T(1,128)}', space=vmem, size = 0x12000, scoped, tag = 'internal scratch']
  #allocation2 [shape = 'bf16[60,48]{1,0:T(8,128)(2,1)}', space=vmem, size = 0x4000, scoped, tag = 'scratch operand']
  #allocation3 [shape = 'bf16[60,128]{1,0:T(8,128)(2,1)}', space=vmem, size = 0x4000, scoped, tag = 'scratch operand']
  %s0 = inlined_call_operand.hbm [shape: bf16[6,16,48], index: 0, kind: input, shape index: {}]
  %s1 = inlined_call_operand.hbm [shape: bf16[3,48,256], index: 1, kind: input, shape index: {}]
  %s2 = inlined_call_operand.hbm [shape: bf16[3,128,128], index: 2, kind: input, shape index: {}]
  %s3 = inlined_call_operand.vmem [shape: f32[2,256], index: 3, kind: input, shape index: {}]
  %s4 = inlined_call_operand.vmem [shape: f32[2,128], index: 4, kind: input, shape index: {}]
  %s5 = inlined_call_operand.hbm [shape: bf16[6,16,128], index: 5, kind: output, shape index: {}]
  %s6 = sld [smem:[#allocation0]]
  $region65: #{tpu_custom_call.1} parent=0
    _
  %s8 = ssub.s32 1, %s6
  %s9 = scalar_select 0, %s8, %s6
  $region1: #{tpu_custom_call.1} parent=0
    #allocation4 [shape = 'u8[24576]{0}', space=vmem, size = 0x6000, scoped, tag = 'input window, operand 0']
    #allocation5 [shape = 's32[2]{0}', space=sflag, size = 0x8, scoped, tag = 'scoped memory for tpu_custom_call.1']
    #allocation6 [shape = 's32[2]{0}', space=sflag, size = 0x8, scoped, tag = 'scoped memory for tpu_custom_call.1']
    #allocation7 [shape = 'u8[73728]{0}', space=vmem, size = 0x12000, scoped, tag = 'input window, operand 1, single buffered']
    #allocation8 [shape = 's32[1]{0}', space=sflag, size = 0x4, scoped, tag = 'scoped memory for tpu_custom_call.1']
    #allocation9 [shape = 'u8[98304]{0}', space=vmem, size = 0x18000, scoped, tag = 'input window, operand 2, single buffered']
    #allocation10 [shape = 'u8[24576]{0}', space=vmem, size = 0x6000, scoped, tag = 'output window, operand 0']
    %10 = vsyncpa [#allocation5], 0
    %s11 = scalar_lea.sflag [#allocation5], 1
    %12 = vsyncpa %s11, 0
    %13 = vsyncpa [#allocation8], 0
    %14 = vsyncpa [#allocation6], 0
    %s15 = scalar_lea.sflag [#allocation6], 1
    %16 = vsyncpa %s15, 0
    loop: start=0, step=1, limit=4
    $region2: #{tpu_custom_call.1} parent=1 // loop_pre_header
      _
    $region3: #{tpu_custom_call.1} parent=1 // loop_header
      %s18 = sphi 0, %s22
      %p19 = scmp.ge.s32.totalorder %s18, 4
      %s28 = sphi 0, %s30
      %s31 = sphi 0, %s28
      %s32 = sphi 0, %s31
      %s48 = sphi 0, %s32
      %s52 = sphi 0, %s52
      %s54 = sphi 0, %s52
      %s55 = sphi 0, %s54
      %s69 = sphi 0, %s55
      %s73 = sphi 0, %s73
      %s75 = sphi 0, %s73
      %s76 = sphi 0, %s75
      %s90 = sphi 0, %s76
      %s94 = sphi 0, %s94
      %s96 = sphi 0, %s94
      %s97 = sphi 0, %s96
      %s111 = sphi 0, %s97
      %s115 = sphi 0, %s115
      %s117 = sphi 0, %s115
      %s118 = sphi 0, %s117
      %s132 = sphi 0, %s118
      %s138 = sphi 0, %s140
      %s141 = sphi 0, %s138
      %s142 = sphi 0, %s141
      %s158 = sphi 0, %s142
    $region4: #{tpu_custom_call.1} parent=1 // loop_header_branch
      %21 = sbr.rel (%p19) target = $region8
    $region5: #{tpu_custom_call.1} parent=1 // loop_body
      %s23 = ssub.s32 %s18, 1
      %s24 = ssub.s32 %s18, 2
      %s25 = sadd.s32 %s18, 1
      %s26 = ssub.s32 %s18, %s25
      %p27 = scmp.eq.s32.totalorder %s26, 0
      %s29 = sadd.s32 %s28, 1
      %s30 = scalar_select %p27, %s28, %s29
      %p33 = pneg %p27
      %p34 = scmp.eq.s32.totalorder %s18, 1
      %p35 = por %p33, %p34
      %p36 = scmp.ne.s32.totalorder %s28, %s31
      %p37 = scmp.eq.s32.totalorder %s18, 0
      %p38 = por %p36, %p37
      %p39 = scmp.ne.s32.totalorder %s28, %s31
      %p40 = scmp.eq.s32.totalorder %s23, 1
      %p41 = por %p39, %p40
      %p42 = scmp.ne.s32.totalorder %s31, %s32
      %p43 = scmp.eq.s32.totalorder %s23, 0
      %p44 = por %p42, %p43
      %p45 = scmp.ne.s32.totalorder %s31, %s32
      %p46 = scmp.eq.s32.totalorder %s24, 1
      %p47 = por %p45, %p46
      %p49 = scmp.ne.s32.totalorder %s32, %s48
      %p50 = scmp.eq.s32.totalorder %s24, 0
      %p51 = por %p49, %p50
      %s53 = sadd.s32 %s52, 1
      %p56 = scmp.eq.s32.totalorder %s18, 1
      %p57 = scmp.ne.s32.totalorder %s52, %s54
      %p58 = scmp.eq.s32.totalorder %s18, 0
      %p59 = por %p57, %p58
      %p60 = scmp.ne.s32.totalorder %s52, %s54
      %p61 = scmp.eq.s32.totalorder %s23, 1
      %p62 = por %p60, %p61
      %p63 = scmp.ne.s32.totalorder %s54, %s55
      %p64 = scmp.eq.s32.totalorder %s23, 0
      %p65 = por %p63, %p64
      %p66 = scmp.ne.s32.totalorder %s54, %s55
      %p67 = scmp.eq.s32.totalorder %s24, 1
      %p68 = por %p66, %p67
      %p70 = scmp.ne.s32.totalorder %s55, %s69
      %p71 = scmp.eq.s32.totalorder %s24, 0
      %p72 = por %p70, %p71
      %s74 = sadd.s32 %s73, 1
      %p77 = scmp.eq.s32.totalorder %s18, 1
      %p78 = scmp.ne.s32.totalorder %s73, %s75
      %p79 = scmp.eq.s32.totalorder %s18, 0
      %p80 = por %p78, %p79
      %p81 = scmp.ne.s32.totalorder %s73, %s75
      %p82 = scmp.eq.s32.totalorder %s23, 1
      %p83 = por %p81, %p82
      %p84 = scmp.ne.s32.totalorder %s75, %s76
      %p85 = scmp.eq.s32.totalorder %s23, 0
      %p86 = por %p84, %p85
      %p87 = scmp.ne.s32.totalorder %s75, %s76
      %p88 = scmp.eq.s32.totalorder %s24, 1
      %p89 = por %p87, %p88
      %p91 = scmp.ne.s32.totalorder %s76, %s90
      %p92 = scmp.eq.s32.totalorder %s24, 0
      %p93 = por %p91, %p92
      %s95 = sadd.s32 %s94, 1
      %p98 = scmp.eq.s32.totalorder %s18, 1
      %p99 = scmp.ne.s32.totalorder %s94, %s96
      %p100 = scmp.eq.s32.totalorder %s18, 0
      %p101 = por %p99, %p100
      %p102 = scmp.ne.s32.totalorder %s94, %s96
      %p103 = scmp.eq.s32.totalorder %s23, 1
      %p104 = por %p102, %p103
      %p105 = scmp.ne.s32.totalorder %s96, %s97
      %p106 = scmp.eq.s32.totalorder %s23, 0
      %p107 = por %p105, %p106
      %p108 = scmp.ne.s32.totalorder %s96, %s97
      %p109 = scmp.eq.s32.totalorder %s24, 1
      %p110 = por %p108, %p109
      %p112 = scmp.ne.s32.totalorder %s97, %s111
      %p113 = scmp.eq.s32.totalorder %s24, 0
      %p114 = por %p112, %p113
      %s116 = sadd.s32 %s115, 1
      %p119 = scmp.eq.s32.totalorder %s18, 1
      %p120 = scmp.ne.s32.totalorder %s115, %s117
      %p121 = scmp.eq.s32.totalorder %s18, 0
      %p122 = por %p120, %p121
      %p123 = scmp.ne.s32.totalorder %s115, %s117
      %p124 = scmp.eq.s32.totalorder %s23, 1
      %p125 = por %p123, %p124
      %p126 = scmp.ne.s32.totalorder %s117, %s118
      %p127 = scmp.eq.s32.totalorder %s23, 0
      %p128 = por %p126, %p127
      %p129 = scmp.ne.s32.totalorder %s117, %s118
      %p130 = scmp.eq.s32.totalorder %s24, 1
      %p131 = por %p129, %p130
      %p133 = scmp.ne.s32.totalorder %s118, %s132
      %p134 = scmp.eq.s32.totalorder %s24, 0
      %p135 = por %p133, %p134
      %s136 = ssub.s32 %s18, %s25
      %p137 = scmp.eq.s32.totalorder %s136, 0
      %s139 = sadd.s32 %s138, 1
      %s140 = scalar_select %p137, %s138, %s139
      %p143 = pneg %p137
      %p144 = scmp.eq.s32.totalorder %s18, 1
      %p145 = por %p143, %p144
      %p146 = scmp.ne.s32.totalorder %s138, %s141
      %p147 = scmp.eq.s32.totalorder %s18, 0
      %p148 = por %p146, %p147
      %p149 = scmp.ne.s32.totalorder %s138, %s141
      %p150 = scmp.eq.s32.totalorder %s23, 1
      %p151 = por %p149, %p150
      %p152 = scmp.ne.s32.totalorder %s141, %s142
      %p153 = scmp.eq.s32.totalorder %s23, 0
      %p154 = por %p152, %p153
      %p155 = scmp.ne.s32.totalorder %s141, %s142
      %p156 = scmp.eq.s32.totalorder %s24, 1
      %p157 = por %p155, %p156
      %p159 = scmp.ne.s32.totalorder %s142, %s158
      %p160 = scmp.eq.s32.totalorder %s24, 0
      %p161 = por %p159, %p160
      %p162 = scmp.le.s32.totalorder 1, %s18
      %p163 = scmp.lt.s32.totalorder %s18, 3
      %p164 = pnand %p162, %p163
      %p165 = pneg %p164
      // Predicated region
      $region9: #{tpu_custom_call.1} parent=5 // pred_check
        _
      $region10: #{tpu_custom_call.1} parent=5 // pred_check_branch
        %167 = sbr.rel (%p164) target = $region12
      $region11: #{tpu_custom_call.1} parent=5 // pred_region
        %s168 = ssub.s32 %s18, 1
        // Predicated region
        $region13: #{tpu_custom_call.1} parent=11 // pred_check
          %p169 = pneg %p65
        $region14: #{tpu_custom_call.1} parent=11 // pred_check_branch
          %171 = sbr.rel (%p169) target = $region16
        $region15: #{tpu_custom_call.1} parent=11 // pred_region
          %s173 = ssub.s32 2304, 2304
          %174 = vsyncadd [#allocation8], %s173
          %s175 = sshll.u32 [#allocation7], 4
          %s176 = int_to_ptr.vmem [resolvable:$true] %s175
          %181 = dma.hbm_to_vmem [thread:$0]  %s1, 2304, %s176, [#allocation8], 128, 128, 8
        $region16: #{tpu_custom_call.1} parent=11 // pred_fallthru
          _
        // Predicated region
        $region17: #{tpu_custom_call.1} parent=11 // pred_check
          %p182 = pneg %p86
        $region18: #{tpu_custom_call.1} parent=11 // pred_check_branch
          %184 = sbr.rel (%p182) target = $region20
        $region19: #{tpu_custom_call.1} parent=11 // pred_region
          %s186 = ssub.s32 3072, 3072
          %187 = vsyncadd [#allocation8], %s186
          %s188 = sshll.u32 [#allocation9], 4
          %s189 = int_to_ptr.vmem [resolvable:$true] %s188
          %194 = dma.hbm_to_vmem [thread:$0]  %s2, 3072, %s189, [#allocation8], 64, 64, 4
        $region20: #{tpu_custom_call.1} parent=11 // pred_fallthru
          _
        // Predicated region
        $region21: #{tpu_custom_call.1} parent=11 // pred_check
          %p195 = pneg %p107
        $region22: #{tpu_custom_call.1} parent=11 // pred_check_branch
          %197 = sbr.rel (%p195) target = $region24
        $region23: #{tpu_custom_call.1} parent=11 // pred_region
          _
        $region24: #{tpu_custom_call.1} parent=11 // pred_fallthru
          _
        // Predicated region
        $region25: #{tpu_custom_call.1} parent=11 // pred_check
          %p198 = pneg %p128
        $region26: #{tpu_custom_call.1} parent=11 // pred_check_branch
          %200 = sbr.rel (%p198) target = $region28
        $region27: #{tpu_custom_call.1} parent=11 // pred_region
          _
        $region28: #{tpu_custom_call.1} parent=11 // pred_fallthru
          _
      $region12: #{tpu_custom_call.1} parent=5 // pred_fallthru
        _
      %p201 = scmp.lt.s32.totalorder %s18, 2
      // Predicated region
      $region29: #{tpu_custom_call.1} parent=5 // pred_check
        %p202 = pneg %p201
      $region30: #{tpu_custom_call.1} parent=5 // pred_check_branch
        %204 = sbr.rel (%p202) target = $region32
      $region31: #{tpu_custom_call.1} parent=5 // pred_region
        // Predicated region
        $region33: #{tpu_custom_call.1} parent=31 // pred_check
          %p205 = pneg %p38
        $region34: #{tpu_custom_call.1} parent=31 // pred_check_branch
          %207 = sbr.rel (%p205) target = $region36
        $region35: #{tpu_custom_call.1} parent=31 // pred_region
          %s208 = sand.u32 %s28, 1
          %s209 = scalar_lea.sflag [#allocation5], %s208
          %s210 = sand.u32 %s28, 1
          %s211 = smul.addr %s210, 24
          %s212 = scalar_lea.vmem [#allocation4], %s211
          %s213 = smul.u32 3, %s18
          %s215 = ssub.s32 384, 384
          %216 = vsyncadd %s209, %s215
          %s217 = smul.addr %s213, 2
          %s218 = smul.addr %s217, 64
          %s219 = scalar_lea.hbm %s0, %s218
          %s220 = sshll.u32 %s212, 4
          %s221 = int_to_ptr.vmem [resolvable:$true] %s220
          %226 = dma.hbm_to_vmem [thread:$0]  %s219, 384, %s221, %s209, 64, 64, 4
        $region36: #{tpu_custom_call.1} parent=31 // pred_fallthru
          _
      $region32: #{tpu_custom_call.1} parent=5 // pred_fallthru
        _
      %p227 = scmp.le.s32.totalorder 1, %s18
      %p228 = scmp.lt.s32.totalorder %s18, 3
      %p229 = pnand %p227, %p228
      %p230 = pneg %p229
      // Predicated region
      $region37: #{tpu_custom_call.1} parent=5 // pred_check
        _
      $region38: #{tpu_custom_call.1} parent=5 // pred_check_branch
        %232 = sbr.rel (%p229) target = $region40
      $region39: #{tpu_custom_call.1} parent=5 // pred_region
        %s233 = ssub.s32 %s18, 1
        %s234 = sand.u32 %s31, 1
        %s235 = scalar_lea.sflag [#allocation5], %s234
        %s236 = sand.u32 %s31, 1
        %s237 = smul.addr %s236, 24
        %s238 = scalar_lea.vmem [#allocation4], %s237
        // Predicated region
        $region41: #{tpu_custom_call.1} parent=39 // pred_check
          %p239 = pneg %p44
        $region42: #{tpu_custom_call.1} parent=39 // pred_check_branch
          %241 = sbr.rel (%p239) target = $region44
        $region43: #{tpu_custom_call.1} parent=39 // pred_region
          %242 = dma.done %s235, 384
        $region44: #{tpu_custom_call.1} parent=39 // pred_fallthru
          _
        // Predicated region
        $region45: #{tpu_custom_call.1} parent=39 // pred_check
          %p243 = pneg %p65
        $region46: #{tpu_custom_call.1} parent=39 // pred_check_branch
          %245 = sbr.rel (%p243) target = $region48
        $region47: #{tpu_custom_call.1} parent=39 // pred_region
          %246 = dma.done [#allocation8], 2304
        $region48: #{tpu_custom_call.1} parent=39 // pred_fallthru
          _
        // Predicated region
        $region49: #{tpu_custom_call.1} parent=39 // pred_check
          %p247 = pneg %p86
        $region50: #{tpu_custom_call.1} parent=39 // pred_check_branch
          %249 = sbr.rel (%p247) target = $region52
        $region51: #{tpu_custom_call.1} parent=39 // pred_region
          %250 = dma.done [#allocation8], 3072
        $region52: #{tpu_custom_call.1} parent=39 // pred_fallthru
          _
        %s251 = sand.u32 %s31, 1
        %s252 = scalar_lea.sflag [#allocation5], %s251
        %s253 = sand.u32 %s31, 1
        %s254 = smul.addr %s253, 24
        %s255 = scalar_lea.vmem [#allocation4], %s254
        %p256 = pneg %p44
        %p257 = pneg %p41
        %p258 = pneg %p65
        %p259 = pneg %p62
        %p260 = pneg %p86
        %p261 = pneg %p83
        %p262 = pneg %p107
        %p263 = pneg %p104
        %p264 = pneg %p128
        %p265 = pneg %p125
        %p266 = pneg %p154
        %p267 = pneg %p151
        %s268 = sand.u32 %s141, 1
        %s269 = scalar_lea.sflag [#allocation6], %s268
        %s270 = sand.u32 %s141, 1
        %s271 = smul.addr %s270, 24
        %s272 = scalar_lea.vmem [#allocation10], %s271
        %s273 = smul.u32 3, %s23
        %s274 = smul.u32 3, %s23
        %vm276 = vcmask 385024
        %277 = vst.msk [vmem:[#allocation2] sm:$0x1] %vm276, 0
        %v278 = vld [vmem:[%s238] sm:$0xf]
        %v279 = vld [vmem:[%s238 + $0x4] sm:$0xf]
        %vm282 = vcmask 1040384
        %vm283 = vcmask 1044484
        %vm284 = vmor %vm282, %vm283
        %v285 = vrot.slane %v278, 7
        %v286 = vrot.slane %v285, 4
        %v287 = vrot.slane %v279, 7
        %v288 = vsel %vm284, %v286, %v287
        %v289 = vrot.slane %v287, 4
        %vm293 = vcmask 388097
        %294 = vst.msk [vmem:[#allocation2] sm:$0xe] %vm293, %v285
        %vm295 = vcmask 388096
        %296 = vst.msk [vmem:[#allocation2 + $0x4] sm:$0xf] %vm295, %v288
        %297 = vst.msk [vmem:[#allocation2 + $0x8] sm:$0x1] %vm276, %v289
        %vm298 = vcmask 386049
        %299 = vst.msk [vmem:[#allocation2 + $0x8] sm:$0x2] %vm298, 0
        %vm300 = vcmask 387074
        %301 = vst.msk [vmem:[#allocation2 + $0x8] sm:$0x4] %vm300, 0
        %s302 = scalar_lea.vmem %s238, 8 [#allocation4]
        %v303 = vld [vmem:[%s302] sm:$0xf]
        %v304 = vld [vmem:[%s302 + $0x4] sm:$0xf]
        %vm307 = vcmask 1042432
        %vm308 = vcmask 1046532
        %vm309 = vmor %vm307, %vm308
        %v310 = vrot.slane %v303, 5
        %v311 = vrot.slane %v310, 4
        %v312 = vrot.slane %v304, 5
        %v313 = vsel %vm309, %v311, %v312
        %v314 = vrot.slane %v312, 4
        %vm318 = vcmask 388099
        %319 = vst.msk [vmem:[#allocation2 + $0x8] sm:$0x8] %vm318, %v310
        %320 = vst.msk [vmem:[#allocation2 + $0xc] sm:$0xf] %vm295, %v313
        %vm321 = vcmask 387072
        %322 = vst.msk [vmem:[#allocation2 + $0x10] sm:$0x7] %vm321, %v314
        %323 = vst.msk [vmem:[#allocation2 + $0x10] sm:$0x8] %vm318, 0
        %324 = vst.msk [vmem:[#allocation2 + $0x14] sm:$0x1] %vm276, 0
        %s325 = scalar_lea.vmem %s238, 16 [#allocation4]
        %v326 = vld [vmem:[%s325] sm:$0xf]
        %v327 = vld [vmem:[%s325 + $0x4] sm:$0xf]
        %v330 = vrot.slane %v326, 7
        %v331 = vrot.slane %v330, 4
        %v332 = vrot.slane %v327, 7
        %v333 = vsel %vm284, %v331, %v332
        %v334 = vrot.slane %v332, 4
        %338 = vst.msk [vmem:[#allocation2 + $0x14] sm:$0xe] %vm293, %v330
        %339 = vst.msk [vmem:[#allocation2 + $0x18] sm:$0xf] %vm295, %v333
        %340 = vst.msk [vmem:[#allocation2 + $0x1c] sm:$0x1] %vm276, %v334
        %341 = vst.msk [vmem:[#allocation2 + $0x1c] sm:$0x2] %vm298, 0
        %v342 = vld [vmem:[#allocation2] sm:$0xf]
        %v343 = vld [vmem:[#allocation2 + $0x4] sm:$0xf]
        %v344 = vld [vmem:[#allocation2 + $0x8] sm:$0xf]
        %v345 = vld [vmem:[#allocation2 + $0xc] sm:$0xf]
        %v346 = vld [vmem:[#allocation2 + $0x10] sm:$0xf]
        %v347 = vld [vmem:[#allocation2 + $0x14] sm:$0xf]
        %v348 = vld [vmem:[#allocation2 + $0x18] sm:$0xf]
        %v349 = vld [vmem:[#allocation2 + $0x1c] sm:$0x1]
        %v350 = vld [vmem:[#allocation7] sm:$0xff]
        %v351 = vld [vmem:[#allocation7 + $0x8] sm:$0xff]
        %v352 = vld [vmem:[#allocation7 + $0x10] sm:$0xff]
        %v353 = vld [vmem:[#allocation7 + $0x18] sm:$0xff]
        %v354 = vld [vmem:[#allocation7 + $0x20] sm:$0xff]
        %v355 = vld [vmem:[#allocation7 + $0x28] sm:$0xff]
        %v356 = vld [vmem:[#allocation2 + $0x1c] sm:$0x3]
        %s357 = scalar_lea.vmem [#allocation7], 48
        %v358 = vld [vmem:[%s357] sm:$0xff]
        %v359 = vld [vmem:[%s357 + $0x8] sm:$0xff]
        %v360 = vld [vmem:[%s357 + $0x10] sm:$0xff]
        %v361 = vld [vmem:[%s357 + $0x18] sm:$0xff]
        %v362 = vld [vmem:[%s357 + $0x20] sm:$0xff]
        %v363 = vld [vmem:[%s357 + $0x28] sm:$0xff]
        %v372 = vunpack.c.l.b16 %v342
        %v373 = vunpack.c.l.b16 %v343
        %v374 = vunpack.c.l.b16 %v344
        %v375 = vunpack.c.l.b16 %v345
        %v376 = vunpack.c.l.b16 %v346
        %v377 = vunpack.c.l.b16 %v347
        %v378 = vunpack.c.l.b16 %v348
        %v379 = vunpack.c.l.b16 %v356
        %v380 = vpack.c.b16 %v373, %v372
        %v381 = vpack.c.b16 %v375, %v374
        %v382 = vpack.c.b16 %v377, %v376
        %v383 = vpack.c.b16 %v379, %v378
        %vm384 = vsmask.f32 7424
        %v386 = vshrl.u32 %v380, 16
        %v388 = vshll.u32 %v380, 16
        %v390 = vrot.slane %v388, 1
        %v391 = vor.u32 %v386, %v390
        %v393 = vshll.u32 %v381, 16
        %v395 = vrot.slane %v393, 1
        %v396 = vsel %vm384, %v391, %v395
        %v397 = vshrl.u32 %v381, 16
        %v399 = vor.u32 %v397, %v395
        %v401 = vshll.u32 %v382, 16
        %v403 = vrot.slane %v401, 1
        %v404 = vsel %vm384, %v399, %v403
        %v405 = vshrl.u32 %v382, 16
        %v407 = vor.u32 %v405, %v403
        %v409 = vshll.u32 %v383, 16
        %v411 = vrot.slane %v409, 1
        %v412 = vsel %vm384, %v407, %v411
        %v413 = vshrl.u32 %v383, 16
        %v415 = vor.u32 %v413, %v411
        %v422 = vunpack.c.l.b16 %v358
        %v423 = vunpack.c.h.b16 %v358
        %v424 = vunpack.c.l.b16 %v359
        %v425 = vunpack.c.h.b16 %v359
        %v426 = vunpack.c.l.b16 %v360
        %v427 = vunpack.c.h.b16 %v360
        %v428 = vunpack.c.l.b16 %v361
        %v429 = vunpack.c.h.b16 %v361
        %v430 = vunpack.c.l.b16 %v362
        %v431 = vunpack.c.h.b16 %v362
        %v432 = vunpack.c.l.b16 %v363
        %v433 = vunpack.c.h.b16 %v363
        %v434 = vpack.c.b16 %v424, %v422
        %v435 = vpack.c.b16 %v425, %v423
        %v436 = vpack.c.b16 %v428, %v426
        %v437 = vpack.c.b16 %v429, %v427
        %v438 = vpack.c.b16 %v432, %v430
        %v439 = vpack.c.b16 %v433, %v431
        %vm446 = vcmask 392192
        %v448 = vsel %vm446, %v396, 0
        %v451 = vsel %vm446, %v404, 0
        %v454 = vsel %vm446, %v412, 0
        %v457 = vsel %vm446, %v415, 0
        %459 = vmatprep.subr.bf16.mxu0 0
        %460 = vmatpush1.bf16.msra.mxu0 0
        %461 = vmatprep.subr.bf16.mxu0 0
        %462 = vmatpush1.bf16.msra.mxu0 0
        %463 = vmatprep.subr.bf16.mxu0 0
        %464 = vmatpush1.bf16.msra.mxu0 0
        %465 = vmatprep.subr.bf16.mxu0 0
        %466 = vmatpush1.bf16.msra.mxu0 0
        %467 = vmatprep.subr.bf16.mxu0 0
        %468 = vmatpush1.bf16.msra.mxu0 0
        %469 = vmatprep.subr.bf16.mxu0 %v439
        %470 = vmatpush1.bf16.msra.mxu0 %v438
        %471 = vmatprep.subr.bf16.mxu0 %v437
        %472 = vmatpush1.bf16.msra.mxu0 %v436
        %473 = vmatprep.subr.bf16.mxu0 %v435
        %474 = vmatpush1.bf16.msra.mxu0 %v434
        %475 = vmatprep.subr.bf16.mxu0 0
        %476 = vmatpush2.bf16.msra.mxu0 0
        %477 = vmatprep.subr.bf16.mxu0 0
        %478 = vmatpush2.bf16.msra.mxu0 0
        %479 = vmatprep.subr.bf16.mxu0 0
        %480 = vmatpush2.bf16.msra.mxu0 0
        %481 = vmatprep.subr.bf16.mxu0 0
        %482 = vmatpush2.bf16.msra.mxu0 0
        %483 = vmatprep.subr.bf16.mxu0 0
        %484 = vmatpush2.bf16.msra.mxu0 0
        %485 = vmatprep.subr.bf16.mxu0 0
        %486 = vmatpush2.bf16.msra.mxu0 0
        %487 = vmatprep.subr.bf16.mxu0 0
        %488 = vmatpush2.bf16.msra.mxu0 0
        %489 = vmatprep.subr.bf16.mxu0 0
        %490 = vmatpush2.bf16.msra.mxu0 0
        %491 = vmatprep.mubr.bf16.mxu0 0
        %492 = vmatmul.mubr.bf16.gmra.mxu0 %v448
        %v493 = vpop.f32.mrf.mxu0
        %v494 = vadd.f32 0.0, %v493
        %v495 = vpop.f32.mrf.mxu0
        %v496 = vadd.f32 0.0, %v495
        %v497 = vpop.f32.mrf.mxu0
        %v498 = vadd.f32 0.0, %v497
        %v499 = vpop.f32.mrf.mxu0
        %v500 = vadd.f32 0.0, %v499
        %501 = vmatprep.mubr.bf16.mxu0 0
        %502 = vmatmul.mubr.bf16.gmra.mxu0 %v451
        %v503 = vpop.f32.mrf.mxu0
        %v504 = vadd.f32 0.0, %v503
        %v505 = vpop.f32.mrf.mxu0
        %v506 = vadd.f32 0.0, %v505
        %v507 = vpop.f32.mrf.mxu0
        %v508 = vadd.f32 0.0, %v507
        %v509 = vpop.f32.mrf.mxu0
        %v510 = vadd.f32 0.0, %v509
        %511 = vmatprep.mubr.bf16.mxu0 0
        %512 = vmatmul.mubr.bf16.gmra.mxu0 %v454
        %v513 = vpop.f32.mrf.mxu0
        %v514 = vadd.f32 0.0, %v513
        %v515 = vpop.f32.mrf.mxu0
        %v516 = vadd.f32 0.0, %v515
        %v517 = vpop.f32.mrf.mxu0
        %v518 = vadd.f32 0.0, %v517
        %v519 = vpop.f32.mrf.mxu0
        %v520 = vadd.f32 0.0, %v519
        %521 = vmatprep.mubr.bf16.mxu0 0
        %522 = vmatmul.mubr.bf16.gmra.mxu0 %v457
        %v523 = vpop.f32.mrf.mxu0
        %v524 = vadd.f32 0.0, %v523
        %v525 = vpop.f32.mrf.mxu0
        %v526 = vadd.f32 0.0, %v525
        %v527 = vpop.f32.mrf.mxu0
        %v528 = vadd.f32 0.0, %v527
        %v529 = vpop.f32.mrf.mxu0
        %v530 = vadd.f32 0.0, %v529
        %531 = vdwg.mxu0
        %v533 = vunpack.c.l.b16 %v349
        %v534 = vpack.c.b16 %v533, %v378
        %v541 = vunpack.c.l.b16 %v350
        %v542 = vunpack.c.h.b16 %v350
        %v543 = vunpack.c.l.b16 %v351
        %v544 = vunpack.c.h.b16 %v351
        %v545 = vunpack.c.l.b16 %v352
        %v546 = vunpack.c.h.b16 %v352
        %v547 = vunpack.c.l.b16 %v353
        %v548 = vunpack.c.h.b16 %v353
        %v549 = vunpack.c.l.b16 %v354
        %v550 = vunpack.c.h.b16 %v354
        %v551 = vunpack.c.l.b16 %v355
        %v552 = vunpack.c.h.b16 %v355
        %v553 = vpack.c.b16 %v543, %v541
        %v554 = vpack.c.b16 %v544, %v542
        %v555 = vpack.c.b16 %v547, %v545
        %v556 = vpack.c.b16 %v548, %v546
        %v557 = vpack.c.b16 %v551, %v549
        %v558 = vpack.c.b16 %v552, %v550
        %v565 = vsel %vm446, %v380, 0
        %v567 = vsel %vm446, %v381, 0
        %v569 = vsel %vm446, %v382, 0
        %v572 = vsel %vm446, %v534, 0
        %574 = vmatprep.subr.bf16.mxu0 0
        %575 = vmatpush1.bf16.msra.mxu0 0
        %576 = vmatprep.subr.bf16.mxu0 0
        %577 = vmatpush1.bf16.msra.mxu0 0
        %578 = vmatprep.subr.bf16.mxu0 0
        %579 = vmatpush1.bf16.msra.mxu0 0
        %580 = vmatprep.subr.bf16.mxu0 0
        %581 = vmatpush1.bf16.msra.mxu0 0
        %582 = vmatprep.subr.bf16.mxu0 0
        %583 = vmatpush1.bf16.msra.mxu0 0
        %584 = vmatprep.subr.bf16.mxu0 %v558
        %585 = vmatpush1.bf16.msra.mxu0 %v557
        %586 = vmatprep.subr.bf16.mxu0 %v556
        %587 = vmatpush1.bf16.msra.mxu0 %v555
        %588 = vmatprep.subr.bf16.mxu0 %v554
        %589 = vmatpush1.bf16.msra.mxu0 %v553
        %590 = vmatprep.subr.bf16.mxu0 0
        %591 = vmatpush2.bf16.msra.mxu0 0
        %592 = vmatprep.subr.bf16.mxu0 0
        %593 = vmatpush2.bf16.msra.mxu0 0
        %594 = vmatprep.subr.bf16.mxu0 0
        %595 = vmatpush2.bf16.msra.mxu0 0
        %596 = vmatprep.subr.bf16.mxu0 0
        %597 = vmatpush2.bf16.msra.mxu0 0
        %598 = vmatprep.subr.bf16.mxu0 0
        %599 = vmatpush2.bf16.msra.mxu0 0
        %600 = vmatprep.subr.bf16.mxu0 0
        %601 = vmatpush2.bf16.msra.mxu0 0
        %602 = vmatprep.subr.bf16.mxu0 0
        %603 = vmatpush2.bf16.msra.mxu0 0
        %604 = vmatprep.subr.bf16.mxu0 0
        %605 = vmatpush2.bf16.msra.mxu0 0
        %606 = vmatprep.mubr.bf16.mxu0 0
        %607 = vmatmul.mubr.bf16.gmra.mxu0 %v565
        %v608 = vpop.f32.mrf.mxu0
        %v609 = vadd.f32 %v494, %v608
        %v610 = vpop.f32.mrf.mxu0
        %v611 = vadd.f32 %v496, %v610
        %v612 = vpop.f32.mrf.mxu0
        %v613 = vadd.f32 %v498, %v612
        %v614 = vpop.f32.mrf.mxu0
        %v615 = vadd.f32 %v500, %v614
        %616 = vmatprep.mubr.bf16.mxu0 0
        %617 = vmatmul.mubr.bf16.gmra.mxu0 %v567
        %v618 = vpop.f32.mrf.mxu0
        %v619 = vadd.f32 %v504, %v618
        %v620 = vpop.f32.mrf.mxu0
        %v621 = vadd.f32 %v506, %v620
        %v622 = vpop.f32.mrf.mxu0
        %v623 = vadd.f32 %v508, %v622
        %v624 = vpop.f32.mrf.mxu0
        %v625 = vadd.f32 %v510, %v624
        %626 = vmatprep.mubr.bf16.mxu0 0
        %627 = vmatmul.mubr.bf16.gmra.mxu0 %v569
        %v628 = vpop.f32.mrf.mxu0
        %v629 = vadd.f32 %v514, %v628
        %v630 = vpop.f32.mrf.mxu0
        %v631 = vadd.f32 %v516, %v630
        %v632 = vpop.f32.mrf.mxu0
        %v633 = vadd.f32 %v518, %v632
        %v634 = vpop.f32.mrf.mxu0
        %v635 = vadd.f32 %v520, %v634
        %636 = vmatprep.mubr.bf16.mxu0 0
        %637 = vmatmul.mubr.bf16.gmra.mxu0 %v572
        %v638 = vpop.f32.mrf.mxu0
        %v639 = vadd.f32 %v524, %v638
        %v640 = vpop.f32.mrf.mxu0
        %v641 = vadd.f32 %v526, %v640
        %v642 = vpop.f32.mrf.mxu0
        %v643 = vadd.f32 %v528, %v642
        %v644 = vpop.f32.mrf.mxu0
        %v645 = vadd.f32 %v530, %v644
        %646 = vdwg.mxu0
        %v647 = vld [vmem:[#allocation2] sm:$0xe]
        %s648 = scalar_lea.vmem [#allocation7], 96
        %v649 = vld [vmem:[%s648] sm:$0xff]
        %v650 = vld [vmem:[%s648 + $0x8] sm:$0xff]
        %v651 = vld [vmem:[%s648 + $0x10] sm:$0xff]
        %v652 = vld [vmem:[%s648 + $0x18] sm:$0xff]
        %v653 = vld [vmem:[%s648 + $0x20] sm:$0xff]
        %v654 = vld [vmem:[%s648 + $0x28] sm:$0xff]
        %v656 = vunpack.c.l.b16 %v647
        %v657 = vpack.c.b16 %v373, %v656
        %vm658 = vcmask 1046528
        %v659 = vrot.slane %v657, 1
        %v660 = vrot.slane %v381, 1
        %v661 = vsel %vm658, %v659, %v660
        %v662 = vrot.slane %v382, 1
        %v663 = vsel %vm658, %v660, %v662
        %v664 = vrot.slane %v383, 1
        %v665 = vsel %vm658, %v662, %v664
        %v672 = vunpack.c.l.b16 %v649
        %v673 = vunpack.c.h.b16 %v649
        %v674 = vunpack.c.l.b16 %v650
        %v675 = vunpack.c.h.b16 %v650
        %v676 = vunpack.c.l.b16 %v651
        %v677 = vunpack.c.h.b16 %v651
        %v678 = vunpack.c.l.b16 %v652
        %v679 = vunpack.c.h.b16 %v652
        %v680 = vunpack.c.l.b16 %v653
        %v681 = vunpack.c.h.b16 %v653
        %v682 = vunpack.c.l.b16 %v654
        %v683 = vunpack.c.h.b16 %v654
        %v684 = vpack.c.b16 %v674, %v672
        %v685 = vpack.c.b16 %v675, %v673
        %v686 = vpack.c.b16 %v678, %v676
        %v687 = vpack.c.b16 %v679, %v677
        %v688 = vpack.c.b16 %v682, %v680
        %v689 = vpack.c.b16 %v683, %v681
        %v697 = vsel %vm446, %v661, 0
        %v700 = vsel %vm446, %v663, 0
        %v703 = vsel %vm446, %v665, 0
        %v706 = vsel %vm446, %v664, 0
        %708 = vmatprep.subr.bf16.mxu0 0
        %709 = vmatpush1.bf16.msra.mxu0 0
        %710 = vmatprep.subr.bf16.mxu0 0
        %711 = vmatpush1.bf16.msra.mxu0 0
        %712 = vmatprep.subr.bf16.mxu0 0
        %713 = vmatpush1.bf16.msra.mxu0 0
        %714 = vmatprep.subr.bf16.mxu0 0
        %715 = vmatpush1.bf16.msra.mxu0 0
        %716 = vmatprep.subr.bf16.mxu0 0
        %717 = vmatpush1.bf16.msra.mxu0 0
        %718 = vmatprep.subr.bf16.mxu0 %v689
        %719 = vmatpush1.bf16.msra.mxu0 %v688
        %720 = vmatprep.subr.bf16.mxu0 %v687
        %721 = vmatpush1.bf16.msra.mxu0 %v686
        %722 = vmatprep.subr.bf16.mxu0 %v685
        %723 = vmatpush1.bf16.msra.mxu0 %v684
        %724 = vmatprep.subr.bf16.mxu0 0
        %725 = vmatpush2.bf16.msra.mxu0 0
        %726 = vmatprep.subr.bf16.mxu0 0
        %727 = vmatpush2.bf16.msra.mxu0 0
        %728 = vmatprep.subr.bf16.mxu0 0
        %729 = vmatpush2.bf16.msra.mxu0 0
        %730 = vmatprep.subr.bf16.mxu0 0
        %731 = vmatpush2.bf16.msra.mxu0 0
        %732 = vmatprep.subr.bf16.mxu0 0
        %733 = vmatpush2.bf16.msra.mxu0 0
        %734 = vmatprep.subr.bf16.mxu0 0
        %735 = vmatpush2.bf16.msra.mxu0 0
        %736 = vmatprep.subr.bf16.mxu0 0
        %737 = vmatpush2.bf16.msra.mxu0 0
        %738 = vmatprep.subr.bf16.mxu0 0
        %739 = vmatpush2.bf16.msra.mxu0 0
        %740 = vmatprep.mubr.bf16.mxu0 0
        %741 = vmatmul.mubr.bf16.gmra.mxu0 %v697
        %v742 = vpop.f32.mrf.mxu0
        %v743 = vadd.f32 0.0, %v742
        %v744 = vpop.f32.mrf.mxu0
        %v745 = vadd.f32 0.0, %v744
        %v746 = vpop.f32.mrf.mxu0
        %v747 = vadd.f32 0.0, %v746
        %v748 = vpop.f32.mrf.mxu0
        %v749 = vadd.f32 0.0, %v748
        %750 = vmatprep.mubr.bf16.mxu0 0
        %751 = vmatmul.mubr.bf16.gmra.mxu0 %v700
        %v752 = vpop.f32.mrf.mxu0
        %v753 = vadd.f32 0.0, %v752
        %v754 = vpop.f32.mrf.mxu0
        %v755 = vadd.f32 0.0, %v754
        %v756 = vpop.f32.mrf.mxu0
        %v757 = vadd.f32 0.0, %v756
        %v758 = vpop.f32.mrf.mxu0
        %v759 = vadd.f32 0.0, %v758
        %760 = vmatprep.mubr.bf16.mxu0 0
        %761 = vmatmul.mubr.bf16.gmra.mxu0 %v703
        %v762 = vpop.f32.mrf.mxu0
        %v763 = vadd.f32 0.0, %v762
        %v764 = vpop.f32.mrf.mxu0
        %v765 = vadd.f32 0.0, %v764
        %v766 = vpop.f32.mrf.mxu0
        %v767 = vadd.f32 0.0, %v766
        %v768 = vpop.f32.mrf.mxu0
        %v769 = vadd.f32 0.0, %v768
        %770 = vmatprep.mubr.bf16.mxu0 0
        %771 = vmatmul.mubr.bf16.gmra.mxu0 %v706
        %v772 = vpop.f32.mrf.mxu0
        %v773 = vadd.f32 0.0, %v772
        %v774 = vpop.f32.mrf.mxu0
        %v775 = vadd.f32 0.0, %v774
        %v776 = vpop.f32.mrf.mxu0
        %v777 = vadd.f32 0.0, %v776
        %v778 = vpop.f32.mrf.mxu0
        %v779 = vadd.f32 0.0, %v778
        %780 = vdwg.mxu0
        %v781 = vadd.f32 %v609, %v743
        %v782 = vadd.f32 %v611, %v745
        %v783 = vadd.f32 %v613, %v747
        %v784 = vadd.f32 %v615, %v749
        %v785 = vadd.f32 %v619, %v753
        %v786 = vadd.f32 %v621, %v755
        %v787 = vadd.f32 %v623, %v757
        %v788 = vadd.f32 %v625, %v759
        %v789 = vadd.f32 %v629, %v763
        %v790 = vadd.f32 %v631, %v765
        %v791 = vadd.f32 %v633, %v767
        %v792 = vadd.f32 %v635, %v769
        %v793 = vadd.f32 %v639, %v773
        %v794 = vadd.f32 %v641, %v775
        %v795 = vadd.f32 %v643, %v777
        %v796 = vadd.f32 %v645, %v779
        %v797 = vld [vmem:[%s3] ss:$2 sm:$0x3]
        %v799 = vlaneseq
        %v800 = vshrl.u32 %v799, 7
        %v801 = vsub.s32 0, %v800
        %v802 = vrot.slane %v797, %v801
        %v803 = vlaneseq
        %v804 = vshrl.u32 %v803, 7
        %v805 = vsub.s32 1, %v804
        %v806 = vrot.slane %v797, %v805
        %v809 = vmul.f32 %v781, %v802
        %v810 = vmul.f32 %v782, %v806
        %v811 = vmul.f32 %v783, %v802
        %v812 = vmul.f32 %v784, %v806
        %v813 = vmul.f32 %v785, %v802
        %v814 = vmul.f32 %v786, %v806
        %v815 = vmul.f32 %v787, %v802
        %v816 = vmul.f32 %v788, %v806
        %v817 = vmul.f32 %v789, %v802
        %v818 = vmul.f32 %v790, %v806
        %v819 = vmul.f32 %v791, %v802
        %v820 = vmul.f32 %v792, %v806
        %v821 = vmul.f32 %v793, %v802
        %v822 = vmul.f32 %v794, %v806
        %v823 = vmul.f32 %v795, %v802
        %v824 = vmul.f32 %v796, %v806
        %s825 = scalar_lea.vmem %s3, 1
        %v826 = vld [vmem:[%s825] ss:$2 sm:$0x3]
        %v828 = vlaneseq
        %v829 = vshrl.u32 %v828, 7
        %v830 = vsub.s32 0, %v829
        %v831 = vrot.slane %v826, %v830
        %v832 = vlaneseq
        %v833 = vshrl.u32 %v832, 7
        %v834 = vsub.s32 1, %v833
        %v835 = vrot.slane %v826, %v834
        %v838 = vadd.f32 %v809, %v831
        %v839 = vadd.f32 %v810, %v835
        %v840 = vadd.f32 %v811, %v831
        %v841 = vadd.f32 %v812, %v835
        %v842 = vadd.f32 %v813, %v831
        %v843 = vadd.f32 %v814, %v835
        %v844 = vadd.f32 %v815, %v831
        %v845 = vadd.f32 %v816, %v835
        %v846 = vadd.f32 %v817, %v831
        %v847 = vadd.f32 %v818, %v835
        %v848 = vadd.f32 %v819, %v831
        %v849 = vadd.f32 %v820, %v835
        %v850 = vadd.f32 %v821, %v831
        %v851 = vadd.f32 %v822, %v835
        %v852 = vadd.f32 %v823, %v831
        %v853 = vadd.f32 %v824, %v835
        %v854 = vmax.f32 %v839, 0.0
        %v855 = vmax.f32 %v841, 0.0
        %v856 = vmax.f32 %v843, 0.0
        %v857 = vmax.f32 %v845, 0.0
        %v858 = vmax.f32 %v847, 0.0
        %v859 = vmax.f32 %v849, 0.0
        %v860 = vmax.f32 %v851, 0.0
        %v861 = vmax.f32 %v853, 0.0
        %v862 = vpack.c.bf16 %v855, %v854
        %v863 = vpack.c.bf16 %v857, %v856
        %v864 = vpack.c.bf16 %v859, %v858
        %v865 = vpack.c.bf16 %v861, %v860
        %v870 = vunpack.c.l.b16 %v862
        %v871 = vunpack.c.h.b16 %v862
        %v872 = vunpack.c.l.b16 %v863
        %v873 = vunpack.c.h.b16 %v863
        %v874 = vunpack.c.l.b16 %v864
        %v875 = vunpack.c.h.b16 %v864
        %v876 = vunpack.c.l.b16 %v865
        %v877 = vunpack.c.h.b16 %v865
        %v878 = vpack.c.b16 %v870, %v870
        %v879 = vpack.c.b16 %v871, %v871
        %v880 = vpack.c.b16 %v872, %v872
        %v881 = vpack.c.b16 %v873, %v873
        %v882 = vpack.c.b16 %v874, %v874
        %v883 = vpack.c.b16 %v875, %v875
        %v884 = vpack.c.b16 %v876, %v876
        %v885 = vpack.c.b16 %v877, %v877
        %vm886 = vsmask.f32 256
        %vm887 = vsmask.f32 4368
        %vm888 = vmor %vm886, %vm887
        %v890 = vshrl.u32 %v878, 16
        %v892 = vrot.slane %v890, 7
        %v893 = vshll.u32 %v878, 16
        %v895 = vor.u32 %v892, %v893
        %v896 = vrot.slane %v892, 4
        %v898 = vshrl.u32 %v879, 16
        %v900 = vrot.slane %v898, 7
        %v901 = vshll.u32 %v879, 16
        %v903 = vor.u32 %v900, %v901
        %v904 = vsel %vm888, %v896, %v903
        %v905 = vrot.slane %v900, 4
        %v907 = vshrl.u32 %v880, 16
        %v909 = vrot.slane %v907, 7
        %v910 = vshll.u32 %v880, 16
        %v912 = vor.u32 %v909, %v910
        %v913 = vsel %vm888, %v905, %v912
        %v914 = vrot.slane %v909, 4
        %v916 = vshrl.u32 %v881, 16
        %v918 = vrot.slane %v916, 7
        %v919 = vshll.u32 %v881, 16
        %v921 = vor.u32 %v918, %v919
        %v922 = vsel %vm888, %v914, %v921
        %v923 = vrot.slane %v918, 4
        %v925 = vshrl.u32 %v882, 16
        %v927 = vrot.slane %v925, 7
        %v928 = vshll.u32 %v882, 16
        %v930 = vor.u32 %v927, %v928
        %v931 = vsel %vm888, %v923, %v930
        %v932 = vrot.slane %v927, 4
        %v934 = vshrl.u32 %v883, 16
        %v936 = vrot.slane %v934, 7
        %v937 = vshll.u32 %v883, 16
        %v939 = vor.u32 %v936, %v937
        %v940 = vsel %vm888, %v932, %v939
        %v941 = vrot.slane %v936, 4
        %v943 = vshrl.u32 %v884, 16
        %v945 = vrot.slane %v943, 7
        %v946 = vshll.u32 %v884, 16
        %v948 = vor.u32 %v945, %v946
        %v949 = vsel %vm888, %v941, %v948
        %v950 = vrot.slane %v945, 4
        %v952 = vshrl.u32 %v885, 16
        %v954 = vrot.slane %v952, 7
        %v955 = vshll.u32 %v885, 16
        %v957 = vor.u32 %v954, %v955
        %v958 = vsel %vm888, %v950, %v957
        %vm967 = vcmask 1043456
        %vm968 = vsmask.f32 7938
        %vm969 = vmand %vm967, %vm968
        %v970 = vld [vmem:[#allocation3] sm:$0xf]
        %v971 = vsel %vm969, %v895, %v970
        %972 = vst [vmem:[#allocation3] sm:$0xf] %v971
        %973 = vst [vmem:[#allocation3 + $0x4] sm:$0xf] %v904
        %974 = vst [vmem:[#allocation3 + $0x8] sm:$0xf] %v913
        %975 = vst [vmem:[#allocation3 + $0xc] sm:$0xf] %v922
        %976 = vst [vmem:[#allocation3 + $0x10] sm:$0xf] %v931
        %977 = vst [vmem:[#allocation3 + $0x14] sm:$0xf] %v940
        %978 = vst [vmem:[#allocation3 + $0x18] sm:$0xf] %v949
        %vm979 = vcmask 1041408
        %vm980 = vsmask.f32 1280
        %vm981 = vmand %vm979, %vm980
        %v982 = vld [vmem:[#allocation3 + $0x1c] sm:$0x3]
        %v983 = vsel %vm981, %v958, %v982
        %984 = vst [vmem:[#allocation3 + $0x1c] sm:$0x3] %v983
        %985 = vst [vmem:[#allocation3] sm:$0x1] 0
        %986 = vst [vmem:[#allocation3 + $0x8] sm:$0x2] 0
        %987 = vst [vmem:[#allocation3 + $0x8] sm:$0x4] 0
        %988 = vst [vmem:[#allocation3 + $0x10] sm:$0x8] 0
        %989 = vst [vmem:[#allocation3 + $0x14] sm:$0x1] 0
        %990 = vst [vmem:[#allocation3 + $0x1c] sm:$0x2] 0
        %v991 = vld [vmem:[#allocation3] sm:$0xf]
        %v992 = vld [vmem:[#allocation3 + $0x4] sm:$0xf]
        %v993 = vld [vmem:[#allocation3 + $0x8] sm:$0xf]
        %v994 = vld [vmem:[#allocation3 + $0xc] sm:$0xf]
        %v995 = vld [vmem:[#allocation3 + $0x10] sm:$0xf]
        %v996 = vld [vmem:[#allocation3 + $0x14] sm:$0xf]
        %v997 = vld [vmem:[#allocation3 + $0x18] sm:$0xf]
        %v998 = vld [vmem:[#allocation3 + $0x1c] sm:$0x1]
        %v999 = vld [vmem:[#allocation9] sm:$0xf]
        %v1000 = vld [vmem:[#allocation9 + $0x4] sm:$0xf]
        %v1001 = vld [vmem:[#allocation9 + $0x8] sm:$0xf]
        %v1002 = vld [vmem:[#allocation9 + $0xc] sm:$0xf]
        %v1003 = vld [vmem:[#allocation9 + $0x10] sm:$0xf]
        %v1004 = vld [vmem:[#allocation9 + $0x14] sm:$0xf]
        %v1005 = vld [vmem:[#allocation9 + $0x18] sm:$0xf]
        %v1006 = vld [vmem:[#allocation9 + $0x1c] sm:$0xf]
        %v1007 = vld [vmem:[#allocation9 + $0x20] sm:$0xf]
        %v1008 = vld [vmem:[#allocation9 + $0x24] sm:$0xf]
        %v1009 = vld [vmem:[#allocation9 + $0x28] sm:$0xf]
        %v1010 = vld [vmem:[#allocation9 + $0x2c] sm:$0xf]
        %v1011 = vld [vmem:[#allocation9 + $0x30] sm:$0xf]
        %v1012 = vld [vmem:[#allocation9 + $0x34] sm:$0xf]
        %v1013 = vld [vmem:[#allocation9 + $0x38] sm:$0xf]
        %v1014 = vld [vmem:[#allocation9 + $0x3c] sm:$0xf]
        %v1015 = vld [vmem:[#allocation3 + $0x1c] sm:$0x3]
        %s1016 = scalar_lea.vmem [#allocation9], 64
        %v1017 = vld [vmem:[%s1016] sm:$0xf]
        %v1018 = vld [vmem:[%s1016 + $0x4] sm:$0xf]
        %v1019 = vld [vmem:[%s1016 + $0x8] sm:$0xf]
        %v1020 = vld [vmem:[%s1016 + $0xc] sm:$0xf]
        %v1021 = vld [vmem:[%s1016 + $0x10] sm:$0xf]
        %v1022 = vld [vmem:[%s1016 + $0x14] sm:$0xf]
        %v1023 = vld [vmem:[%s1016 + $0x18] sm:$0xf]
        %v1024 = vld [vmem:[%s1016 + $0x1c] sm:$0xf]
        %v1025 = vld [vmem:[%s1016 + $0x20] sm:$0xf]
        %v1026 = vld [vmem:[%s1016 + $0x24] sm:$0xf]
        %v1027 = vld [vmem:[%s1016 + $0x28] sm:$0xf]
        %v1028 = vld [vmem:[%s1016 + $0x2c] sm:$0xf]
        %v1029 = vld [vmem:[%s1016 + $0x30] sm:$0xf]
        %v1030 = vld [vmem:[%s1016 + $0x34] sm:$0xf]
        %v1031 = vld [vmem:[%s1016 + $0x38] sm:$0xf]
        %v1032 = vld [vmem:[%s1016 + $0x3c] sm:$0xf]
        %v1041 = vunpack.c.l.b16 %v991
        %v1042 = vunpack.c.l.b16 %v992
        %v1043 = vunpack.c.l.b16 %v993
        %v1044 = vunpack.c.l.b16 %v994
        %v1045 = vunpack.c.l.b16 %v995
        %v1046 = vunpack.c.l.b16 %v996
        %v1047 = vunpack.c.l.b16 %v997
        %v1048 = vunpack.c.l.b16 %v1015
        %v1049 = vpack.c.b16 %v1042, %v1041
        %v1050 = vpack.c.b16 %v1044, %v1043
        %v1051 = vpack.c.b16 %v1046, %v1045
        %v1052 = vpack.c.b16 %v1048, %v1047
        %v1054 = vshrl.u32 %v1049, 16
        %v1056 = vshll.u32 %v1049, 16
        %v1058 = vrot.slane %v1056, 1
        %v1059 = vor.u32 %v1054, %v1058
        %v1061 = vshll.u32 %v1050, 16
        %v1063 = vrot.slane %v1061, 1
        %v1064 = vsel %vm384, %v1059, %v1063
        %v1065 = vshrl.u32 %v1050, 16
        %v1067 = vor.u32 %v1065, %v1063
        %v1069 = vshll.u32 %v1051, 16
        %v1071 = vrot.slane %v1069, 1
        %v1072 = vsel %vm384, %v1067, %v1071
        %v1073 = vshrl.u32 %v1051, 16
        %v1075 = vor.u32 %v1073, %v1071
        %v1077 = vshll.u32 %v1052, 16
        %v1079 = vrot.slane %v1077, 1
        %v1080 = vsel %vm384, %v1075, %v1079
        %v1081 = vshrl.u32 %v1052, 16
        %v1083 = vor.u32 %v1081, %v1079
        %v1104 = vunpack.c.l.b16 %v1017
        %v1105 = vunpack.c.l.b16 %v1018
        %v1106 = vunpack.c.l.b16 %v1019
        %v1107 = vunpack.c.l.b16 %v1020
        %v1108 = vunpack.c.l.b16 %v1021
        %v1109 = vunpack.c.l.b16 %v1022
        %v1110 = vunpack.c.l.b16 %v1023
        %v1111 = vunpack.c.l.b16 %v1024
        %v1112 = vunpack.c.l.b16 %v1025
        %v1113 = vunpack.c.l.b16 %v1026
        %v1114 = vunpack.c.l.b16 %v1027
        %v1115 = vunpack.c.l.b16 %v1028
        %v1116 = vunpack.c.l.b16 %v1029
        %v1117 = vunpack.c.l.b16 %v1030
        %v1118 = vunpack.c.l.b16 %v1031
        %v1119 = vunpack.c.l.b16 %v1032
        %v1120 = vpack.c.b16 %v1105, %v1104
        %v1121 = vpack.c.b16 %v1107, %v1106
        %v1122 = vpack.c.b16 %v1109, %v1108
        %v1123 = vpack.c.b16 %v1111, %v1110
        %v1124 = vpack.c.b16 %v1113, %v1112
        %v1125 = vpack.c.b16 %v1115, %v1114
        %v1126 = vpack.c.b16 %v1117, %v1116
        %v1127 = vpack.c.b16 %v1119, %v1118
        %1136 = vmatprep.subr.bf16.mxu0 0
        %1137 = vmatpush1.bf16.msra.mxu0 %v1127
        %1138 = vmatprep.subr.bf16.mxu0 0
        %1139 = vmatpush1.bf16.msra.mxu0 %v1126
        %1140 = vmatprep.subr.bf16.mxu0 0
        %1141 = vmatpush1.bf16.msra.mxu0 %v1125
        %1142 = vmatprep.subr.bf16.mxu0 0
        %1143 = vmatpush1.bf16.msra.mxu0 %v1124
        %1144 = vmatprep.subr.bf16.mxu0 0
        %1145 = vmatpush1.bf16.msra.mxu0 %v1123
        %1146 = vmatprep.subr.bf16.mxu0 0
        %1147 = vmatpush1.bf16.msra.mxu0 %v1122
        %1148 = vmatprep.subr.bf16.mxu0 0
        %1149 = vmatpush1.bf16.msra.mxu0 %v1121
        %1150 = vmatprep.subr.bf16.mxu0 0
        %1151 = vmatpush1.bf16.msra.mxu0 %v1120
        %1152 = vmatprep.subr.bf16.mxu0 0
        %1153 = vmatpush2.bf16.msra.mxu0 0
        %1154 = vmatprep.subr.bf16.mxu0 0
        %1155 = vmatpush2.bf16.msra.mxu0 0
        %1156 = vmatprep.subr.bf16.mxu0 0
        %1157 = vmatpush2.bf16.msra.mxu0 0
        %1158 = vmatprep.subr.bf16.mxu0 0
        %1159 = vmatpush2.bf16.msra.mxu0 0
        %1160 = vmatprep.subr.bf16.mxu0 0
        %1161 = vmatpush2.bf16.msra.mxu0 0
        %1162 = vmatprep.subr.bf16.mxu0 0
        %1163 = vmatpush2.bf16.msra.mxu0 0
        %1164 = vmatprep.subr.bf16.mxu0 0
        %1165 = vmatpush2.bf16.msra.mxu0 0
        %1166 = vmatprep.subr.bf16.mxu0 0
        %1167 = vmatpush2.bf16.msra.mxu0 0
        %1168 = vmatprep.mubr.bf16.mxu0 0
        %1169 = vmatmul.mubr.bf16.gmra.mxu0 %v1064
        %v1170 = vpop.f32.mrf.mxu0
        %v1171 = vadd.f32 0.0, %v1170
        %v1172 = vpop.f32.mrf.mxu0
        %v1173 = vpop.f32.mrf.mxu0
        %v1174 = vadd.f32 0.0, %v1173
        %v1175 = vpop.f32.mrf.mxu0
        %1176 = vmatprep.mubr.bf16.mxu0 0
        %1177 = vmatmul.mubr.bf16.gmra.mxu0 %v1072
        %v1178 = vpop.f32.mrf.mxu0
        %v1179 = vadd.f32 0.0, %v1178
        %v1180 = vpop.f32.mrf.mxu0
        %v1181 = vpop.f32.mrf.mxu0
        %v1182 = vadd.f32 0.0, %v1181
        %v1183 = vpop.f32.mrf.mxu0
        %1184 = vmatprep.mubr.bf16.mxu0 0
        %1185 = vmatmul.mubr.bf16.gmra.mxu0 %v1080
        %v1186 = vpop.f32.mrf.mxu0
        %v1187 = vadd.f32 0.0, %v1186
        %v1188 = vpop.f32.mrf.mxu0
        %v1189 = vpop.f32.mrf.mxu0
        %v1190 = vadd.f32 0.0, %v1189
        %v1191 = vpop.f32.mrf.mxu0
        %1192 = vmatprep.mubr.bf16.mxu0 0
        %1193 = vmatmul.mubr.bf16.gmra.mxu0 %v1083
        %v1194 = vpop.f32.mrf.mxu0
        %v1195 = vadd.f32 0.0, %v1194
        %v1196 = vpop.f32.mrf.mxu0
        %v1197 = vpop.f32.mrf.mxu0
        %v1198 = vadd.f32 0.0, %v1197
        %v1199 = vpop.f32.mrf.mxu0
        %1200 = vdwg.mxu0
        %v1202 = vunpack.c.l.b16 %v998
        %v1203 = vpack.c.b16 %v1202, %v1047
        %v1224 = vunpack.c.l.b16 %v999
        %v1225 = vunpack.c.l.b16 %v1000
        %v1226 = vunpack.c.l.b16 %v1001
        %v1227 = vunpack.c.l.b16 %v1002
        %v1228 = vunpack.c.l.b16 %v1003
        %v1229 = vunpack.c.l.b16 %v1004
        %v1230 = vunpack.c.l.b16 %v1005
        %v1231 = vunpack.c.l.b16 %v1006
        %v1232 = vunpack.c.l.b16 %v1007
        %v1233 = vunpack.c.l.b16 %v1008
        %v1234 = vunpack.c.l.b16 %v1009
        %v1235 = vunpack.c.l.b16 %v1010
        %v1236 = vunpack.c.l.b16 %v1011
        %v1237 = vunpack.c.l.b16 %v1012
        %v1238 = vunpack.c.l.b16 %v1013
        %v1239 = vunpack.c.l.b16 %v1014
        %v1240 = vpack.c.b16 %v1225, %v1224
        %v1241 = vpack.c.b16 %v1227, %v1226
        %v1242 = vpack.c.b16 %v1229, %v1228
        %v1243 = vpack.c.b16 %v1231, %v1230
        %v1244 = vpack.c.b16 %v1233, %v1232
        %v1245 = vpack.c.b16 %v1235, %v1234
        %v1246 = vpack.c.b16 %v1237, %v1236
        %v1247 = vpack.c.b16 %v1239, %v1238
        %1256 = vmatprep.subr.bf16.mxu0 0
        %1257 = vmatpush1.bf16.msra.mxu0 %v1247
        %1258 = vmatprep.subr.bf16.mxu0 0
        %1259 = vmatpush1.bf16.msra.mxu0 %v1246
        %1260 = vmatprep.subr.bf16.mxu0 0
        %1261 = vmatpush1.bf16.msra.mxu0 %v1245
        %1262 = vmatprep.subr.bf16.mxu0 0
        %1263 = vmatpush1.bf16.msra.mxu0 %v1244
        %1264 = vmatprep.subr.bf16.mxu0 0
        %1265 = vmatpush1.bf16.msra.mxu0 %v1243
        %1266 = vmatprep.subr.bf16.mxu0 0
        %1267 = vmatpush1.bf16.msra.mxu0 %v1242
        %1268 = vmatprep.subr.bf16.mxu0 0
        %1269 = vmatpush1.bf16.msra.mxu0 %v1241
        %1270 = vmatprep.subr.bf16.mxu0 0
        %1271 = vmatpush1.bf16.msra.mxu0 %v1240
        %1272 = vmatprep.subr.bf16.mxu0 0
        %1273 = vmatpush2.bf16.msra.mxu0 0
        %1274 = vmatprep.subr.bf16.mxu0 0
        %1275 = vmatpush2.bf16.msra.mxu0 0
        %1276 = vmatprep.subr.bf16.mxu0 0
        %1277 = vmatpush2.bf16.msra.mxu0 0
        %1278 = vmatprep.subr.bf16.mxu0 0
        %1279 = vmatpush2.bf16.msra.mxu0 0
        %1280 = vmatprep.subr.bf16.mxu0 0
        %1281 = vmatpush2.bf16.msra.mxu0 0
        %1282 = vmatprep.subr.bf16.mxu0 0
        %1283 = vmatpush2.bf16.msra.mxu0 0
        %1284 = vmatprep.subr.bf16.mxu0 0
        %1285 = vmatpush2.bf16.msra.mxu0 0
        %1286 = vmatprep.subr.bf16.mxu0 0
        %1287 = vmatpush2.bf16.msra.mxu0 0
        %1288 = vmatprep.mubr.bf16.mxu0 0
        %1289 = vmatmul.mubr.bf16.gmra.mxu0 %v1049
        %v1290 = vpop.f32.mrf.mxu0
        %v1291 = vadd.f32 %v1171, %v1290
        %v1292 = vpop.f32.mrf.mxu0
        %v1293 = vpop.f32.mrf.mxu0
        %v1294 = vadd.f32 %v1174, %v1293
        %v1295 = vpop.f32.mrf.mxu0
        %1296 = vmatprep.mubr.bf16.mxu0 0
        %1297 = vmatmul.mubr.bf16.gmra.mxu0 %v1050
        %v1298 = vpop.f32.mrf.mxu0
        %v1299 = vadd.f32 %v1179, %v1298
        %v1300 = vpop.f32.mrf.mxu0
        %v1301 = vpop.f32.mrf.mxu0
        %v1302 = vadd.f32 %v1182, %v1301
        %v1303 = vpop.f32.mrf.mxu0
        %1304 = vmatprep.mubr.bf16.mxu0 0
        %1305 = vmatmul.mubr.bf16.gmra.mxu0 %v1051
        %v1306 = vpop.f32.mrf.mxu0
        %v1307 = vadd.f32 %v1187, %v1306
        %v1308 = vpop.f32.mrf.mxu0
        %v1309 = vpop.f32.mrf.mxu0
        %v1310 = vadd.f32 %v1190, %v1309
        %v1311 = vpop.f32.mrf.mxu0
        %1312 = vmatprep.mubr.bf16.mxu0 0
        %1313 = vmatmul.mubr.bf16.gmra.mxu0 %v1203
        %v1314 = vpop.f32.mrf.mxu0
        %v1315 = vadd.f32 %v1195, %v1314
        %v1316 = vpop.f32.mrf.mxu0
        %v1317 = vpop.f32.mrf.mxu0
        %v1318 = vadd.f32 %v1198, %v1317
        %v1319 = vpop.f32.mrf.mxu0
        %1320 = vdwg.mxu0
        %v1321 = vld [vmem:[#allocation3] sm:$0xe]
        %s1322 = scalar_lea.vmem [#allocation9], 128
        %v1323 = vld [vmem:[%s1322] sm:$0xf]
        %v1324 = vld [vmem:[%s1322 + $0x4] sm:$0xf]
        %v1325 = vld [vmem:[%s1322 + $0x8] sm:$0xf]
        %v1326 = vld [vmem:[%s1322 + $0xc] sm:$0xf]
        %v1327 = vld [vmem:[%s1322 + $0x10] sm:$0xf]
        %v1328 = vld [vmem:[%s1322 + $0x14] sm:$0xf]
        %v1329 = vld [vmem:[%s1322 + $0x18] sm:$0xf]
        %v1330 = vld [vmem:[%s1322 + $0x1c] sm:$0xf]
        %v1331 = vld [vmem:[%s1322 + $0x20] sm:$0xf]
        %v1332 = vld [vmem:[%s1322 + $0x24] sm:$0xf]
        %v1333 = vld [vmem:[%s1322 + $0x28] sm:$0xf]
        %v1334 = vld [vmem:[%s1322 + $0x2c] sm:$0xf]
        %v1335 = vld [vmem:[%s1322 + $0x30] sm:$0xf]
        %v1336 = vld [vmem:[%s1322 + $0x34] sm:$0xf]
        %v1337 = vld [vmem:[%s1322 + $0x38] sm:$0xf]
        %v1338 = vld [vmem:[%s1322 + $0x3c] sm:$0xf]
        %v1340 = vunpack.c.l.b16 %v1321
        %v1341 = vpack.c.b16 %v1042, %v1340
        %v1342 = vrot.slane %v1341, 1
        %v1343 = vrot.slane %v1050, 1
        %v1344 = vsel %vm658, %v1342, %v1343
        %v1345 = vrot.slane %v1051, 1
        %v1346 = vsel %vm658, %v1343, %v1345
        %v1347 = vrot.slane %v1052, 1
        %v1348 = vsel %vm658, %v1345, %v1347
        %v1369 = vunpack.c.l.b16 %v1323
        %v1370 = vunpack.c.l.b16 %v1324
        %v1371 = vunpack.c.l.b16 %v1325
        %v1372 = vunpack.c.l.b16 %v1326
        %v1373 = vunpack.c.l.b16 %v1327
        %v1374 = vunpack.c.l.b16 %v1328
        %v1375 = vunpack.c.l.b16 %v1329
        %v1376 = vunpack.c.l.b16 %v1330
        %v1377 = vunpack.c.l.b16 %v1331
        %v1378 = vunpack.c.l.b16 %v1332
        %v1379 = vunpack.c.l.b16 %v1333
        %v1380 = vunpack.c.l.b16 %v1334
        %v1381 = vunpack.c.l.b16 %v1335
        %v1382 = vunpack.c.l.b16 %v1336
        %v1383 = vunpack.c.l.b16 %v1337
        %v1384 = vunpack.c.l.b16 %v1338
        %v1385 = vpack.c.b16 %v1370, %v1369
        %v1386 = vpack.c.b16 %v1372, %v1371
        %v1387 = vpack.c.b16 %v1374, %v1373
        %v1388 = vpack.c.b16 %v1376, %v1375
        %v1389 = vpack.c.b16 %v1378, %v1377
        %v1390 = vpack.c.b16 %v1380, %v1379
        %v1391 = vpack.c.b16 %v1382, %v1381
        %v1392 = vpack.c.b16 %v1384, %v1383
        %1401 = vmatprep.subr.bf16.mxu0 0
        %1402 = vmatpush1.bf16.msra.mxu0 %v1392
        %1403 = vmatprep.subr.bf16.mxu0 0
        %1404 = vmatpush1.bf16.msra.mxu0 %v1391
        %1405 = vmatprep.subr.bf16.mxu0 0
        %1406 = vmatpush1.bf16.msra.mxu0 %v1390
        %1407 = vmatprep.subr.bf16.mxu0 0
        %1408 = vmatpush1.bf16.msra.mxu0 %v1389
        %1409 = vmatprep.subr.bf16.mxu0 0
        %1410 = vmatpush1.bf16.msra.mxu0 %v1388
        %1411 = vmatprep.subr.bf16.mxu0 0
        %1412 = vmatpush1.bf16.msra.mxu0 %v1387
        %1413 = vmatprep.subr.bf16.mxu0 0
        %1414 = vmatpush1.bf16.msra.mxu0 %v1386
        %1415 = vmatprep.subr.bf16.mxu0 0
        %1416 = vmatpush1.bf16.msra.mxu0 %v1385
        %1417 = vmatprep.subr.bf16.mxu0 0
        %1418 = vmatpush2.bf16.msra.mxu0 0
        %1419 = vmatprep.subr.bf16.mxu0 0
        %1420 = vmatpush2.bf16.msra.mxu0 0
        %1421 = vmatprep.subr.bf16.mxu0 0
        %1422 = vmatpush2.bf16.msra.mxu0 0
        %1423 = vmatprep.subr.bf16.mxu0 0
        %1424 = vmatpush2.bf16.msra.mxu0 0
        %1425 = vmatprep.subr.bf16.mxu0 0
        %1426 = vmatpush2.bf16.msra.mxu0 0
        %1427 = vmatprep.subr.bf16.mxu0 0
        %1428 = vmatpush2.bf16.msra.mxu0 0
        %1429 = vmatprep.subr.bf16.mxu0 0
        %1430 = vmatpush2.bf16.msra.mxu0 0
        %1431 = vmatprep.subr.bf16.mxu0 0
        %1432 = vmatpush2.bf16.msra.mxu0 0
        %1433 = vmatprep.mubr.bf16.mxu0 0
        %1434 = vmatmul.mubr.bf16.gmra.mxu0 %v1344
        %v1435 = vpop.f32.mrf.mxu0
        %v1436 = vadd.f32 0.0, %v1435
        %v1437 = vpop.f32.mrf.mxu0
        %v1438 = vpop.f32.mrf.mxu0
        %v1439 = vadd.f32 0.0, %v1438
        %v1440 = vpop.f32.mrf.mxu0
        %1441 = vmatprep.mubr.bf16.mxu0 0
        %1442 = vmatmul.mubr.bf16.gmra.mxu0 %v1346
        %v1443 = vpop.f32.mrf.mxu0
        %v1444 = vadd.f32 0.0, %v1443
        %v1445 = vpop.f32.mrf.mxu0
        %v1446 = vpop.f32.mrf.mxu0
        %v1447 = vadd.f32 0.0, %v1446
        %v1448 = vpop.f32.mrf.mxu0
        %1449 = vmatprep.mubr.bf16.mxu0 0
        %1450 = vmatmul.mubr.bf16.gmra.mxu0 %v1348
        %v1451 = vpop.f32.mrf.mxu0
        %v1452 = vadd.f32 0.0, %v1451
        %v1453 = vpop.f32.mrf.mxu0
        %v1454 = vpop.f32.mrf.mxu0
        %v1455 = vadd.f32 0.0, %v1454
        %v1456 = vpop.f32.mrf.mxu0
        %1457 = vmatprep.mubr.bf16.mxu0 0
        %1458 = vmatmul.mubr.bf16.gmra.mxu0 %v1347
        %v1459 = vpop.f32.mrf.mxu0
        %v1460 = vadd.f32 0.0, %v1459
        %v1461 = vpop.f32.mrf.mxu0
        %v1462 = vpop.f32.mrf.mxu0
        %v1463 = vadd.f32 0.0, %v1462
        %v1464 = vpop.f32.mrf.mxu0
        %1465 = vdwg.mxu0
        %v1466 = vadd.f32 %v1291, %v1436
        %v1467 = vadd.f32 %v1294, %v1439
        %v1468 = vadd.f32 %v1299, %v1444
        %v1469 = vadd.f32 %v1302, %v1447
        %v1470 = vadd.f32 %v1307, %v1452
        %v1471 = vadd.f32 %v1310, %v1455
        %v1472 = vadd.f32 %v1315, %v1460
        %v1473 = vadd.f32 %v1318, %v1463
        %v1474 = vld [vmem:[%s4] sm:$0x1]
        %v1475 = vlaneseq
        %v1476 = vshrl.u32 %v1475, 7
        %v1477 = vsub.s32 0, %v1476
        %v1478 = vrot.slane %v1474, %v1477
        %v1479 = vmul.f32 %v1466, %v1478
        %v1480 = vmul.f32 %v1467, %v1478
        %v1481 = vmul.f32 %v1468, %v1478
        %v1482 = vmul.f32 %v1469, %v1478
        %v1483 = vmul.f32 %v1470, %v1478
        %v1484 = vmul.f32 %v1471, %v1478
        %v1485 = vmul.f32 %v1472, %v1478
        %v1486 = vmul.f32 %v1473, %v1478
        %v1487 = vld [vmem:[%s4 + $0x1] sm:$0x1]
        %v1488 = vlaneseq
        %v1489 = vshrl.u32 %v1488, 7
        %v1490 = vsub.s32 0, %v1489
        %v1491 = vrot.slane %v1487, %v1490
        %v1492 = vadd.f32 %v1479, %v1491
        %v1493 = vadd.f32 %v1480, %v1491
        %v1494 = vadd.f32 %v1481, %v1491
        %v1495 = vadd.f32 %v1482, %v1491
        %v1496 = vadd.f32 %v1483, %v1491
        %v1497 = vadd.f32 %v1484, %v1491
        %v1498 = vadd.f32 %v1485, %v1491
        %v1499 = vadd.f32 %v1486, %v1491
        %v1500 = vmax.f32 %v1492, 0.0
        %v1501 = vmax.f32 %v1493, 0.0
        %v1502 = vmax.f32 %v1494, 0.0
        %v1503 = vmax.f32 %v1495, 0.0
        %v1504 = vmax.f32 %v1496, 0.0
        %v1505 = vmax.f32 %v1497, 0.0
        %v1506 = vmax.f32 %v1498, 0.0
        %v1507 = vmax.f32 %v1499, 0.0
        %v1508 = vadd.f32 %v1500, %v838
        %v1509 = vadd.f32 %v1501, %v840
        %v1510 = vadd.f32 %v1502, %v842
        %v1511 = vadd.f32 %v1503, %v844
        %v1512 = vadd.f32 %v1504, %v846
        %v1513 = vadd.f32 %v1505, %v848
        %v1514 = vadd.f32 %v1506, %v850
        %v1515 = vadd.f32 %v1507, %v852
        %v1516 = vpack.c.bf16 %v1509, %v1508
        %v1517 = vpack.c.bf16 %v1510, %v1510
        %v1520 = vunpack.c.l.b16 %v1516
        %v1521 = vunpack.c.h.b16 %v1516
        %v1522 = vunpack.c.l.b16 %v1517
        %v1523 = vpack.c.b16 %v1520, %v1520
        %v1524 = vpack.c.b16 %v1521, %v1521
        %v1525 = vpack.c.b16 %v1522, %v1522
        %vm1526 = vsmask.f32 3328
        %vm1527 = vsmask.f32 7440
        %vm1528 = vmor %vm1526, %vm1527
        %v1530 = vshrl.u32 %v1523, 16
        %v1532 = vrot.slane %v1530, 4
        %v1533 = vshll.u32 %v1523, 16
        %v1535 = vrot.slane %v1533, 5
        %v1536 = vor.u32 %v1532, %v1535
        %v1537 = vrot.slane %v1536, 4
        %v1539 = vshll.u32 %v1524, 16
        %v1541 = vrot.slane %v1539, 5
        %v1542 = vsel %vm1528, %v1537, %v1541
        %v1543 = vshrl.u32 %v1524, 16
        %v1545 = vrot.slane %v1543, 4
        %v1546 = vor.u32 %v1545, %v1541
        %v1547 = vrot.slane %v1546, 4
        %v1549 = vshll.u32 %v1525, 16
        %v1551 = vrot.slane %v1549, 5
        %v1552 = vsel %vm1528, %v1547, %v1551
        %1555 = vst [vmem:[%s272] sm:$0xf] %v1542
        %1556 = vst [vmem:[%s272 + $0x4] sm:$0xf] %v1552
        %v1557 = vpack.c.bf16 %v1511, %v1510
        %v1558 = vpack.c.bf16 %v1512, %v1512
        %v1561 = vunpack.c.l.b16 %v1557
        %v1562 = vunpack.c.h.b16 %v1557
        %v1563 = vunpack.c.l.b16 %v1558
        %v1564 = vpack.c.b16 %v1561, %v1561
        %v1565 = vpack.c.b16 %v1562, %v1562
        %v1566 = vpack.c.b16 %v1563, %v1563
        %vm1567 = vsmask.f32 5392
        %vm1568 = vmor %vm980, %vm1567
        %v1570 = vshrl.u32 %v1564, 16
        %v1572 = vrot.slane %v1570, 6
        %v1573 = vshll.u32 %v1564, 16
        %v1575 = vrot.slane %v1573, 7
        %v1576 = vor.u32 %v1572, %v1575
        %v1577 = vrot.slane %v1576, 4
        %v1579 = vshrl.u32 %v1565, 16
        %v1581 = vrot.slane %v1579, 6
        %v1582 = vshll.u32 %v1565, 16
        %v1584 = vrot.slane %v1582, 7
        %v1585 = vor.u32 %v1581, %v1584
        %v1586 = vsel %vm1568, %v1577, %v1585
        %v1587 = vrot.slane %v1585, 4
        %v1589 = vshrl.u32 %v1566, 16
        %v1591 = vrot.slane %v1589, 6
        %v1592 = vshll.u32 %v1566, 16
        %v1594 = vrot.slane %v1592, 7
        %v1595 = vor.u32 %v1591, %v1594
        %v1596 = vsel %vm1568, %v1587, %v1595
        %s1599 = scalar_lea.vmem %s272, 8 [#allocation10]
        %1600 = vst [vmem:[%s1599] sm:$0xf] %v1586
        %1601 = vst [vmem:[%s1599 + $0x4] sm:$0xf] %v1596
        %v1602 = vpack.c.bf16 %v1514, %v1513
        %v1603 = vpack.c.bf16 %v1515, %v1515
        %v1606 = vunpack.c.l.b16 %v1602
        %v1607 = vunpack.c.h.b16 %v1602
        %v1608 = vunpack.c.l.b16 %v1603
        %v1609 = vpack.c.b16 %v1606, %v1606
        %v1610 = vpack.c.b16 %v1607, %v1607
        %v1611 = vpack.c.b16 %v1608, %v1608
        %v1613 = vshrl.u32 %v1609, 16
        %v1615 = vrot.slane %v1613, 4
        %v1616 = vshll.u32 %v1609, 16
        %v1618 = vrot.slane %v1616, 5
        %v1619 = vor.u32 %v1615, %v1618
        %v1620 = vrot.slane %v1619, 4
        %v1622 = vshll.u32 %v1610, 16
        %v1624 = vrot.slane %v1622, 5
        %v1625 = vsel %vm1528, %v1620, %v1624
        %v1626 = vshrl.u32 %v1610, 16
        %v1628 = vrot.slane %v1626, 4
        %v1629 = vor.u32 %v1628, %v1624
        %v1630 = vrot.slane %v1629, 4
        %v1632 = vshll.u32 %v1611, 16
        %v1634 = vrot.slane %v1632, 5
        %v1635 = vsel %vm1528, %v1630, %v1634
        %s1638 = scalar_lea.vmem %s272, 16 [#allocation10]
        %1639 = vst [vmem:[%s1638] sm:$0xf] %v1625
        %1640 = vst [vmem:[%s1638 + $0x4] sm:$0xf] %v1635
        %s1641 = sand.u32 %s141, 1
        %s1642 = scalar_lea.sflag [#allocation6], %s1641
        %s1643 = sand.u32 %s141, 1
        %s1644 = smul.addr %s1643, 24
        %s1645 = scalar_lea.vmem [#allocation10], %s1644
        // Predicated region
        $region53: #{tpu_custom_call.1} parent=39 // pred_check
          %p1646 = pneg %p151
        $region54: #{tpu_custom_call.1} parent=39 // pred_check_branch
          %1648 = sbr.rel (%p1646) target = $region56
        $region55: #{tpu_custom_call.1} parent=39 // pred_region
          %s1649 = smul.u32 3, %s23
          %s1651 = ssub.s32 384, 384
          %1652 = vsyncadd %s1642, %s1651
          %s1653 = smul.addr %s1649, 2
          %s1654 = smul.addr %s1653, 64
          %s1655 = scalar_lea.hbm %s5, %s1654
          %s1656 = sshll.u32 %s1645, 4
          %s1657 = int_to_ptr.vmem [resolvable:$true] %s1656
          %1662 = dma.vmem_to_hbm [thread:$0]  %s1657, 384, %s1655, %s1642, 64, 64, 4
        $region56: #{tpu_custom_call.1} parent=39 // pred_fallthru
          _
      $region40: #{tpu_custom_call.1} parent=5 // pred_fallthru
        _
      %p1663 = scmp.le.s32.totalorder 2, %s18
      // Predicated region
      $region57: #{tpu_custom_call.1} parent=5 // pred_check
        %p1664 = pneg %p1663
      $region58: #{tpu_custom_call.1} parent=5 // pred_check_branch
        %1666 = sbr.rel (%p1664) target = $region60
      $region59: #{tpu_custom_call.1} parent=5 // pred_region
        %s1667 = ssub.s32 %s18, 2
        // Predicated region
        $region61: #{tpu_custom_call.1} parent=59 // pred_check
          %p1668 = pneg %p157
        $region62: #{tpu_custom_call.1} parent=59 // pred_check_branch
          %1670 = sbr.rel (%p1668) target = $region64
        $region63: #{tpu_custom_call.1} parent=59 // pred_region
          %s1671 = sand.u32 %s142, 1
          %s1672 = scalar_lea.sflag [#allocation6], %s1671
          %s1673 = sand.u32 %s142, 1
          %s1674 = smul.addr %s1673, 24
          %s1675 = scalar_lea.vmem [#allocation10], %s1674
          %1676 = dma.done %s1672, 384
        $region64: #{tpu_custom_call.1} parent=59 // pred_fallthru
          _
      $region60: #{tpu_custom_call.1} parent=5 // pred_fallthru
        _
    $region6: #{tpu_custom_call.1} parent=1 // loop_footer
      %s22 = sadd.s32 1, %s18
    $region7: #{tpu_custom_call.1} parent=1 // loop_footer_branch
      %17 = sbr.rel target = $region3
    $region8: #{tpu_custom_call.1} parent=1 // loop_exit
      _
    %1677 = vsyncpa [#allocation5], 1
    %s1678 = scalar_lea.sflag [#allocation5], 1
    %1679 = vsyncpa %s1678, 1
    %1680 = vsyncpa [#allocation8], 1
    %1681 = vsyncpa [#allocation6], 1
    %s1682 = scalar_lea.sflag [#allocation6], 1
    %1683 = vsyncpa %s1682, 1

</llo_original>
